<compile_context>
chip_gen: v6e
topology: v6e:2x2x1
jax: 0.10.0
libtpu: 0.0.40
codegen_flags: <defaults>
</compile_context>

<pallas_src>
import functools

import jax
import jax.numpy as jnp
from jax import lax
from jax.experimental import pallas as pl
from jax.experimental.pallas import tpu as pltpu


def _round_up(x, m):
    return ((x + m - 1) // m) * m


def _gru_chunk_kernel(lens_ref, x_ref, wi_ref, wh_ref, bi_ref, bh_ref,
                      w1_ref, b1_ref, w2_ref, b2_ref,
                      out_ref, gi_ref, h_ref):
    """One grid step = one chunk of Tc timesteps of the GRU recurrence.

    lens_ref : (Bp, 1)      i32  VMEM   true sequence lengths (0 for padded rows)
    x_ref    : (Tc*Bp, E)   bf16 VMEM   this chunk's embeddings, row = t_local*Bp + b
    wi_ref   : (E, 3Hp) bf16, wh_ref: (Hp, 3Hp) bf16   fused GRU weights (gates r,z,n),
                                                       each gate padded to Hp=128k lanes
    bi_ref   : (1, 3Hp) f32,  bh_ref: (1, 3Hp) f32     fused GRU biases (zero-padded)
    w1/b1    : (Hp, Hp) bf16 / (1, Hp) f32             classifier hidden layer
    w2/b2    : (Hp, Cp) bf16 / (1, Cp) f32             classifier output, lane-padded
    out_ref  : (Bp, Cp)     f32                         lane-dense logits (written on
                                                        the last chunk only)
    gi_ref   : (Tc*Bp, 3Hp) f32  VMEM scratch           chunk input projections
    h_ref    : (Bp, Hp)     f32  VMEM scratch           hidden state carried across chunks
    """
    chunk = pl.program_id(0)
    n_chunks = pl.num_programs(0)
    Bp = lens_ref.shape[0]
    Hp = wh_ref.shape[0]
    Tc = x_ref.shape[0] // Bp

    @pl.when(chunk == 0)
    def _():
        h_ref[...] = jnp.zeros_like(h_ref)

    # Chunk input projection: one bf16 MXU matmul for all Tc timesteps of this chunk,
    # input bias folded in.  Row t_local*Bp + b holds x[t, b] @ W_i + b_i.
    gi_ref[...] = (
        jnp.dot(x_ref[...], wi_ref[...], preferred_element_type=jnp.float32)
        + bi_ref[...]
    )

    # Loop-invariant operands loaded once per chunk.
    lens = lens_ref[...]          # (Bp, 1) int32
    wh = wh_ref[...]              # (Hp, 3Hp) bf16
    bh = bh_ref[...]              # (1, 3Hp) f32
    t_base = chunk * Tc           # global time offset of this chunk

    def step(t, h):
        off = pl.multiple_of(t * Bp, Bp)                  # Bp is a multiple of 16
        gi = gi_ref[pl.ds(off, Bp), :]                    # (Bp, 3Hp), b_i included
        gh = (jnp.dot(h.astype(wh.dtype), wh, preferred_element_type=jnp.float32)
              + bh)                                       # (Bp, 3Hp)

        # PyTorch GRU gate math (gate order r, z, n); gate slices are 128-lane aligned:
        #   r = sigmoid(W_ir x + b_ir + W_hr h + b_hr)
        #   z = sigmoid(W_iz x + b_iz + W_hz h + b_hz)
        #   n = tanh(W_in x + b_in + r * (W_hn h + b_hn))
        r = jax.nn.sigmoid(gi[:, :Hp] + gh[:, :Hp])
        z = jax.nn.sigmoid(gi[:, Hp:2 * Hp] + gh[:, Hp:2 * Hp])
        n = jnp.tanh(gi[:, 2 * Hp:] + r * gh[:, 2 * Hp:])
        h_new = n + z * (h - n)                           # == (1-z)*n + z*h

        # Packed-sequence semantics: freeze h once global t >= seq_len[b].
        return jnp.where(t_base + t < lens, h_new, h)

    h_ref[...] = lax.fori_loop(0, Tc, step, h_ref[...], unroll=True)

    # Classifier head: Linear -> ReLU -> (Dropout = identity in eval) -> Linear.
    @pl.when(chunk == n_chunks - 1)
    def _():
        h_final = h_ref[...]
        hid = jnp.maximum(
            jnp.dot(h_final.astype(w1_ref.dtype), w1_ref[...],
                    preferred_element_type=jnp.float32) + b1_ref[...],
            0.0,
        )
        out_ref[...] = (
            jnp.dot(hid.astype(w2_ref.dtype), w2_ref[...],
                    preferred_element_type=jnp.float32) + b2_ref[...]
        ).astype(out_ref.dtype)


def sentiment_network_forward(tokens, seq_lens, packed, *, time_chunk=4):
    """Forward pass matching SentimentNetwork.forward (eval mode).

    tokens   : (B, T) int32 token ids
    seq_lens : (B,)   int32 true lengths (<= T)
    packed   : output of pack_params()
    returns  : (B, num_classes) float32 logits
    """
    B, T = tokens.shape
    E = packed["emb_table"].shape[1]
    Hp = packed["w_h"].shape[0]
    Cp = packed["w2"].shape[1]
    C = packed["num_classes"]

    Bp = _round_up(max(B, 16), 16)          # sublane / bf16-pack aligned batch rows
    Tc = max(1, min(time_chunk, T))         # timesteps per grid chunk
    Tp = _round_up(T, Tc)
    n_chunks = Tp // Tc

    # --- glue: time-major embedding gather (no (B,T,E) transpose), bf16 activations ---
    x_tbe = packed["emb_table"][tokens.T].astype(jnp.bfloat16)     # (T, B, E)
    x_tbe = jnp.pad(x_tbe, ((0, Tp - T), (0, Bp - B), (0, 0)))     # (Tp, Bp, E)
    x2d = x_tbe.reshape(Tp * Bp, E)                                # row = t*Bp + b

    lens2d = jnp.pad(seq_lens.astype(jnp.int32), (0, Bp - B)).reshape(Bp, 1)

    flops = (2 * Tp * Bp * E * 3 * Hp            # chunked input projections
             + 2 * Tp * Bp * Hp * 3 * Hp         # per-step hidden matmuls
             + 2 * Bp * Hp * Hp + 2 * Bp * Hp * Cp)
    bytes_accessed = (x2d.size * 2 + lens2d.size * 4 + Bp * Cp * 4
                      + 2 * (E * 3 * Hp + Hp * 3 * Hp + Hp * Hp + Hp * Cp)   # bf16 weights
                      + 4 * (2 * 3 * Hp + Hp + Cp))                          # f32 biases
    cost = pl.CostEstimate(flops=flops,
                           transcendentals=Tp * Bp * 3 * Hp,
                           bytes_accessed=bytes_accessed)

    out = pl.pallas_call(
        _gru_chunk_kernel,
        out_shape=jax.ShapeDtypeStruct((Bp, Cp), jnp.float32),
        grid_spec=pltpu.PrefetchScalarGridSpec(
            num_scalar_prefetch=0,
            grid=(n_chunks,),
            in_specs=[
                pl.BlockSpec((Bp, 1), lambda c: (0, 0)),           # lens (resident)
                pl.BlockSpec((Tc * Bp, E), lambda c: (c, 0)),      # x chunk (pipelined)
                pl.BlockSpec((E, 3 * Hp), lambda c: (0, 0)),       # W_i  (resident)
                pl.BlockSpec((Hp, 3 * Hp), lambda c: (0, 0)),      # W_h
                pl.BlockSpec((1, 3 * Hp), lambda c: (0, 0)),       # b_i
                pl.BlockSpec((1, 3 * Hp), lambda c: (0, 0)),       # b_h
                pl.BlockSpec((Hp, Hp), lambda c: (0, 0)),          # W1
                pl.BlockSpec((1, Hp), lambda c: (0, 0)),           # b1
                pl.BlockSpec((Hp, Cp), lambda c: (0, 0)),          # W2 (lane-padded)
                pl.BlockSpec((1, Cp), lambda c: (0, 0)),           # b2
            ],
            out_specs=pl.BlockSpec((Bp, Cp), lambda c: (0, 0)),
            scratch_shapes=[
                pltpu.VMEM((Tc * Bp, 3 * Hp), jnp.float32),        # chunk input proj
                pltpu.VMEM((Bp, Hp), jnp.float32),                 # carried hidden state
            ],
        ),
        compiler_params=pltpu.CompilerParams(
            dimension_semantics=("arbitrary",),        # serial recurrence over chunks
            vmem_limit_bytes=48 * 1024 * 1024,         # explicit budget, fits v7x 64 MiB
        ),
        cost_estimate=cost,
    )(lens2d, x2d,
      packed["w_i"], packed["w_h"], packed["b_i"], packed["b_h"],
      packed["w1"], packed["b1"], packed["w2"], packed["b2"])

    return out[:B, :C]


def init_params(key, vocab_size, embed_size, hidden_sz, num_classes=4):
    """Deterministic init mirroring the PyTorch module's parameters.

    nn.GRU holds weight_ih_l0 (3H,E), weight_hh_l0 (3H,H), bias_ih_l0 (3H,),
    bias_hh_l0 (3H,) in gate order (r, z, n), all ~U(-1/sqrt(H), 1/sqrt(H)).
    We keep per-gate arrays pre-transposed for x @ W matmuls.
    """
    ks = jax.random.split(key, 17)
    s = hidden_sz ** -0.5

    def u(k, shape, scale):
        return jax.random.uniform(k, shape, jnp.float32, -scale, scale)

    return {
        "emb_table": u(ks[0], (vocab_size, embed_size), 1.0),
        "w_ir": u(ks[1], (embed_size, hidden_sz), s),
        "w_iz": u(ks[2], (embed_size, hidden_sz), s),
        "w_in": u(ks[3], (embed_size, hidden_sz), s),
        "w_hr": u(ks[4], (hidden_sz, hidden_sz), s),
        "w_hz": u(ks[5], (hidden_sz, hidden_sz), s),
        "w_hn": u(ks[6], (hidden_sz, hidden_sz), s),
        "b_ir": u(ks[7], (1, hidden_sz), s),
        "b_iz": u(ks[8], (1, hidden_sz), s),
        "b_in": u(ks[9], (1, hidden_sz), s),
        "b_hr": u(ks[10], (1, hidden_sz), s),
        "b_hz": u(ks[11], (1, hidden_sz), s),
        "b_hn": u(ks[12], (1, hidden_sz), s),
        "w1": u(ks[13], (hidden_sz, hidden_sz), s),
        "b1": u(ks[14], (1, hidden_sz), s),
        "w2": u(ks[15], (hidden_sz, num_classes), s),
        "b2": u(ks[16], (1, num_classes), s),
    }


def pack_params(params):
    """Pad each GRU gate (and the head) to 128-lane slots, fuse gates, cast
    matmul operands to bf16 (biases stay f32).  Zero padding is closed under the
    GRU update, so padded hidden columns remain exactly 0."""
    E, H = params["w_ir"].shape
    C = params["w2"].shape[1]
    Hp = _round_up(max(H, 128), 128)
    Cp = 128

    def pad2(a, rows, cols):
        return jnp.pad(a, ((0, rows - a.shape[0]), (0, cols - a.shape[1])))

    def fuse(names, rows):
        return jnp.concatenate([pad2(params[n], rows, Hp) for n in names], axis=1)

    return {
        "emb_table": params["emb_table"],
        "w_i": fuse(("w_ir", "w_iz", "w_in"), E).astype(jnp.bfloat16),    # (E, 3Hp)
        "w_h": fuse(("w_hr", "w_hz", "w_hn"), Hp).astype(jnp.bfloat16),   # (Hp, 3Hp)
        "b_i": fuse(("b_ir", "b_iz", "b_in"), 1),                         # (1, 3Hp) f32
        "b_h": fuse(("b_hr", "b_hz", "b_hn"), 1),                         # (1, 3Hp) f32
        "w1": pad2(params["w1"], Hp, Hp).astype(jnp.bfloat16),            # (Hp, Hp)
        "b1": pad2(params["b1"], 1, Hp),                                  # (1, Hp)  f32
        "w2": pad2(params["w2"], Hp, Cp).astype(jnp.bfloat16),            # (Hp, Cp)
        "b2": pad2(params["b2"], 1, Cp),                                  # (1, Cp)  f32
        "num_classes": C,
    }


if __name__ == "__main__":
    # Small, deterministic example shapes consistent with the module's forward:
    # batch=4, seq_len=8, embed_size=16, hidden_sz=32, vocab=50, classes=4.
    B, T, E, H, V = 4, 8, 16, 32, 50

    key = jax.random.PRNGKey(0)
    k_tok, k_param = jax.random.split(key)

    tokens = jax.random.randint(k_tok, (B, T), 0, V, dtype=jnp.int32)
    seq_lens = jnp.array([8, 5, 3, 6], dtype=jnp.int32)  # true lengths <= T

    params = init_params(k_param, V, E, H)
    packed = pack_params(params)

    fwd = jax.jit(functools.partial(sentiment_network_forward,
                                    packed=packed, time_chunk=4))
    logits = fwd(tokens, seq_lens)
    jax.block_until_ready(logits)

    assert logits.shape == (B, 4)
    assert logits.dtype == jnp.float32
    assert bool(jnp.all(jnp.isfinite(logits)))
    print("KERNEL_OK")
</pallas_src>

<mosaic_0001>
module attributes {stable_mosaic.version = 11 : i64} {
  func.func @_gru_chunk_kernel(%arg0: i32, %arg1: memref<16x1xi32, #tpu.memory_space<vmem>>, %arg2: memref<64x16xbf16, #tpu.memory_space<vmem>>, %arg3: memref<16x384xbf16, #tpu.memory_space<vmem>>, %arg4: memref<128x384xbf16, #tpu.memory_space<vmem>>, %arg5: memref<1x384xf32, #tpu.memory_space<vmem>>, %arg6: memref<1x384xf32, #tpu.memory_space<vmem>>, %arg7: memref<128x128xbf16, #tpu.memory_space<vmem>>, %arg8: memref<1x128xf32, #tpu.memory_space<vmem>>, %arg9: memref<128x128xbf16, #tpu.memory_space<vmem>>, %arg10: memref<1x128xf32, #tpu.memory_space<vmem>>, %arg11: memref<16x128xf32, #tpu.memory_space<vmem>>, %arg12: memref<64x384xf32, #tpu.memory_space<vmem>>, %arg13: memref<16x128xf32, #tpu.memory_space<vmem>>) attributes {dimension_semantics = [#tpu.dimension_semantics<arbitrary>], iteration_bounds = array<i64: 2>, scalar_prefetch = 0 : i64, scratch_operands = 2 : i64, tpu.core_type = #tpu.core_type<tc>, window_params = [{pipeline_mode = #tpu.pipeline_mode<synchronous>, transform_indices = @transform_0, window_bounds = array<i64: 16, 1>}, {transform_indices = @transform_1, window_bounds = array<i64: 64, 16>}, {pipeline_mode = #tpu.pipeline_mode<synchronous>, transform_indices = @transform_2, window_bounds = array<i64: 16, 384>}, {pipeline_mode = #tpu.pipeline_mode<synchronous>, transform_indices = @transform_3, window_bounds = array<i64: 128, 384>}, {pipeline_mode = #tpu.pipeline_mode<synchronous>, transform_indices = @transform_4, window_bounds = array<i64: 1, 384>}, {pipeline_mode = #tpu.pipeline_mode<synchronous>, transform_indices = @transform_5, window_bounds = array<i64: 1, 384>}, {pipeline_mode = #tpu.pipeline_mode<synchronous>, transform_indices = @transform_6, window_bounds = array<i64: 128, 128>}, {pipeline_mode = #tpu.pipeline_mode<synchronous>, transform_indices = @transform_7, window_bounds = array<i64: 1, 128>}, {pipeline_mode = #tpu.pipeline_mode<synchronous>, transform_indices = @transform_8, window_bounds = array<i64: 128, 128>}, {pipeline_mode = #tpu.pipeline_mode<synchronous>, transform_indices = @transform_9, window_bounds = array<i64: 1, 128>}, {pipeline_mode = #tpu.pipeline_mode<synchronous>, transform_indices = @transform_10, window_bounds = array<i64: 16, 128>}]} {
    %c0_i32 = arith.constant 0 : i32
    %0 = arith.cmpi eq, %arg0, %c0_i32 : i32
    %1 = arith.extui %0 : i1 to i32
    %c0_i32_0 = arith.constant 0 : i32
    %2 = arith.cmpi ne, %1, %c0_i32_0 : i32
    scf.if %2 {
      %cst_41 = arith.constant 0.000000e+00 : f32
      %171 = vector.broadcast %cst_41 : f32 to vector<16x128xf32>
      %c0_42 = arith.constant 0 : index
      %c0_43 = arith.constant 0 : index
      %172 = vector.load %arg13[%c0_42, %c0_43] : memref<16x128xf32, #tpu.memory_space<vmem>>, vector<16x128xf32>
      tpu.vector_store %arg13[%c0_42, %c0_43], %171 {strides = array<i32>} : memref<16x128xf32, #tpu.memory_space<vmem>>, vector<16x128xf32>,
    } else {
    }
    %c0 = arith.constant 0 : index
    %c0_1 = arith.constant 0 : index
    %3 = vector.load %arg2[%c0, %c0_1] : memref<64x16xbf16, #tpu.memory_space<vmem>>, vector<64x16xbf16>
    %c0_2 = arith.constant 0 : index
    %c0_3 = arith.constant 0 : index
    %4 = vector.load %arg3[%c0_2, %c0_3] : memref<16x384xbf16, #tpu.memory_space<vmem>>, vector<16x384xbf16>
    %cst = arith.constant dense<0.000000e+00> : vector<64x384xf32>
    %5 = tpu.matmul %3, %4, %cst {dimension_numbers = #tpu.dot_dimension_numbers<[1], [0], [0], [1], [0, 0, 1, 1], [], []>} : vector<64x16xbf16>, vector<16x384xbf16>, vector<64x384xf32> -> vector<64x384xf32>
    %c0_4 = arith.constant 0 : index
    %c0_5 = arith.constant 0 : index
    %6 = vector.load %arg5[%c0_4, %c0_5] : memref<1x384xf32, #tpu.memory_space<vmem>>, vector<1x384xf32>
    %7 = vector.broadcast %6 : vector<1x384xf32> to vector<64x384xf32>
    %8 = arith.addf %5, %7 : vector<64x384xf32>
    %c0_6 = arith.constant 0 : index
    %c0_7 = arith.constant 0 : index
    %9 = vector.load %arg12[%c0_6, %c0_7] : memref<64x384xf32, #tpu.memory_space<vmem>>, vector<64x384xf32>
    tpu.vector_store %arg12[%c0_6, %c0_7], %8 {strides = array<i32>} : memref<64x384xf32, #tpu.memory_space<vmem>>, vector<64x384xf32>,
    %c0_8 = arith.constant 0 : index
    %c0_9 = arith.constant 0 : index
    %10 = vector.load %arg1[%c0_8, %c0_9] : memref<16x1xi32, #tpu.memory_space<vmem>>, vector<16x1xi32>
    %c0_10 = arith.constant 0 : index
    %c0_11 = arith.constant 0 : index
    %11 = vector.load %arg4[%c0_10, %c0_11] : memref<128x384xbf16, #tpu.memory_space<vmem>>, vector<128x384xbf16>
    %c0_12 = arith.constant 0 : index
    %c0_13 = arith.constant 0 : index
    %12 = vector.load %arg6[%c0_12, %c0_13] : memref<1x384xf32, #tpu.memory_space<vmem>>, vector<1x384xf32>
    %c4_i32 = arith.constant 4 : i32
    %13 = arith.muli %arg0, %c4_i32 : i32
    %c0_14 = arith.constant 0 : index
    %c0_15 = arith.constant 0 : index
    %14 = vector.load %arg13[%c0_14, %c0_15] : memref<16x128xf32, #tpu.memory_space<vmem>>, vector<16x128xf32>
    %c0_i32_16 = arith.constant 0 : i32
    %c16_i32 = arith.constant 16 : i32
    %15 = arith.muli %c0_i32_16, %c16_i32 : i32
    %16 = tpu.assume_multiple %15, 16 : i32
    %17 = arith.index_cast %16 : i32 to index
    %c0_17 = arith.constant 0 : index
    %18 = vector.load %arg12[%17, %c0_17] : memref<64x384xf32, #tpu.memory_space<vmem>>, vector<16x384xf32>
    %19 = arith.truncf %14 : vector<16x128xf32> to vector<16x128xbf16>
    %cst_18 = arith.constant dense<0.000000e+00> : vector<16x384xf32>
    %20 = tpu.matmul %19, %11, %cst_18 {dimension_numbers = #tpu.dot_dimension_numbers<[1], [0], [0], [1], [0, 0, 1, 1], [], []>} : vector<16x128xbf16>, vector<128x384xbf16>, vector<16x384xf32> -> vector<16x384xf32>
    %21 = vector.broadcast %12 : vector<1x384xf32> to vector<16x384xf32>
    %22 = arith.addf %20, %21 : vector<16x384xf32>
    %23 = vector.extract_strided_slice %18 {offsets = [0, 0], sizes = [16, 128], strides = [1, 1]} : vector<16x384xf32> to vector<16x128xf32>
    %24 = vector.extract_strided_slice %22 {offsets = [0, 0], sizes = [16, 128], strides = [1, 1]} : vector<16x384xf32> to vector<16x128xf32>
    %25 = arith.addf %23, %24 : vector<16x128xf32>
    %26 = arith.negf %25 : vector<16x128xf32>
    %27 = math.exp %26 : vector<16x128xf32>
    %cst_19 = arith.constant 1.000000e+00 : f32
    %28 = vector.broadcast %cst_19 : f32 to vector<16x128xf32>
    %29 = arith.addf %28, %27 : vector<16x128xf32>
    %30 = arith.divf %28, %29 : vector<16x128xf32>
    %31 = vector.extract_strided_slice %18 {offsets = [0, 128], sizes = [16, 128], strides = [1, 1]} : vector<16x384xf32> to vector<16x128xf32>
    %32 = vector.extract_strided_slice %22 {offsets = [0, 128], sizes = [16, 128], strides = [1, 1]} : vector<16x384xf32> to vector<16x128xf32>
    %33 = arith.addf %31, %32 : vector<16x128xf32>
    %34 = arith.negf %33 : vector<16x128xf32>
    %35 = math.exp %34 : vector<16x128xf32>
    %cst_20 = arith.constant 1.000000e+00 : f32
    %36 = vector.broadcast %cst_20 : f32 to vector<16x128xf32>
    %37 = arith.addf %36, %35 : vector<16x128xf32>
    %38 = arith.divf %36, %37 : vector<16x128xf32>
    %39 = vector.extract_strided_slice %18 {offsets = [0, 256], sizes = [16, 128], strides = [1, 1]} : vector<16x384xf32> to vector<16x128xf32>
    %40 = vector.extract_strided_slice %22 {offsets = [0, 256], sizes = [16, 128], strides = [1, 1]} : vector<16x384xf32> to vector<16x128xf32>
    %41 = arith.mulf %30, %40 : vector<16x128xf32>
    %42 = arith.addf %39, %41 : vector<16x128xf32>
    %43 = math.tanh %42 : vector<16x128xf32>
    %44 = arith.subf %14, %43 : vector<16x128xf32>
    %45 = arith.mulf %38, %44 : vector<16x128xf32>
    %46 = arith.addf %43, %45 : vector<16x128xf32>
    %47 = arith.addi %13, %c0_i32_16 : i32
    %48 = vector.broadcast %47 : i32 to vector<16x1xi32>
    %49 = arith.cmpi slt, %48, %10 : vector<16x1xi32>
    %50 = vector.shape_cast %49 : vector<16x1xi1> to vector<16x1xi1>
    %51 = vector.broadcast %50 : vector<16x1xi1> to vector<16x128xi1>
    %52 = arith.select %51, %46, %14 : vector<16x128xi1>, vector<16x128xf32>
    %c1_i32 = arith.constant 1 : i32
    %c16_i32_21 = arith.constant 16 : i32
    %53 = arith.muli %c1_i32, %c16_i32_21 : i32
    %54 = tpu.assume_multiple %53, 16 : i32
    %55 = arith.index_cast %54 : i32 to index
    %c0_22 = arith.constant 0 : index
    %56 = vector.load %arg12[%55, %c0_22] : memref<64x384xf32, #tpu.memory_space<vmem>>, vector<16x384xf32>
    %57 = arith.truncf %52 : vector<16x128xf32> to vector<16x128xbf16>
    %cst_23 = arith.constant dense<0.000000e+00> : vector<16x384xf32>
    %58 = tpu.matmul %57, %11, %cst_23 {dimension_numbers = #tpu.dot_dimension_numbers<[1], [0], [0], [1], [0, 0, 1, 1], [], []>} : vector<16x128xbf16>, vector<128x384xbf16>, vector<16x384xf32> -> vector<16x384xf32>
    %59 = vector.broadcast %12 : vector<1x384xf32> to vector<16x384xf32>
    %60 = arith.addf %58, %59 : vector<16x384xf32>
    %61 = vector.extract_strided_slice %56 {offsets = [0, 0], sizes = [16, 128], strides = [1, 1]} : vector<16x384xf32> to vector<16x128xf32>
    %62 = vector.extract_strided_slice %60 {offsets = [0, 0], sizes = [16, 128], strides = [1, 1]} : vector<16x384xf32> to vector<16x128xf32>
    %63 = arith.addf %61, %62 : vector<16x128xf32>
    %64 = arith.negf %63 : vector<16x128xf32>
    %65 = math.exp %64 : vector<16x128xf32>
    %cst_24 = arith.constant 1.000000e+00 : f32
    %66 = vector.broadcast %cst_24 : f32 to vector<16x128xf32>
    %67 = arith.addf %66, %65 : vector<16x128xf32>
    %68 = arith.divf %66, %67 : vector<16x128xf32>
    %69 = vector.extract_strided_slice %56 {offsets = [0, 128], sizes = [16, 128], strides = [1, 1]} : vector<16x384xf32> to vector<16x128xf32>
    %70 = vector.extract_strided_slice %60 {offsets = [0, 128], sizes = [16, 128], strides = [1, 1]} : vector<16x384xf32> to vector<16x128xf32>
    %71 = arith.addf %69, %70 : vector<16x128xf32>
    %72 = arith.negf %71 : vector<16x128xf32>
    %73 = math.exp %72 : vector<16x128xf32>
    %cst_25 = arith.constant 1.000000e+00 : f32
    %74 = vector.broadcast %cst_25 : f32 to vector<16x128xf32>
    %75 = arith.addf %74, %73 : vector<16x128xf32>
    %76 = arith.divf %74, %75 : vector<16x128xf32>
    %77 = vector.extract_strided_slice %56 {offsets = [0, 256], sizes = [16, 128], strides = [1, 1]} : vector<16x384xf32> to vector<16x128xf32>
    %78 = vector.extract_strided_slice %60 {offsets = [0, 256], sizes = [16, 128], strides = [1, 1]} : vector<16x384xf32> to vector<16x128xf32>
    %79 = arith.mulf %68, %78 : vector<16x128xf32>
    %80 = arith.addf %77, %79 : vector<16x128xf32>
    %81 = math.tanh %80 : vector<16x128xf32>
    %82 = arith.subf %52, %81 : vector<16x128xf32>
    %83 = arith.mulf %76, %82 : vector<16x128xf32>
    %84 = arith.addf %81, %83 : vector<16x128xf32>
    %85 = arith.addi %13, %c1_i32 : i32
    %86 = vector.broadcast %85 : i32 to vector<16x1xi32>
    %87 = arith.cmpi slt, %86, %10 : vector<16x1xi32>
    %88 = vector.shape_cast %87 : vector<16x1xi1> to vector<16x1xi1>
    %89 = vector.broadcast %88 : vector<16x1xi1> to vector<16x128xi1>
    %90 = arith.select %89, %84, %52 : vector<16x128xi1>, vector<16x128xf32>
    %c2_i32 = arith.constant 2 : i32
    %c16_i32_26 = arith.constant 16 : i32
    %91 = arith.muli %c2_i32, %c16_i32_26 : i32
    %92 = tpu.assume_multiple %91, 16 : i32
    %93 = arith.index_cast %92 : i32 to index
    %c0_27 = arith.constant 0 : index
    %94 = vector.load %arg12[%93, %c0_27] : memref<64x384xf32, #tpu.memory_space<vmem>>, vector<16x384xf32>
    %95 = arith.truncf %90 : vector<16x128xf32> to vector<16x128xbf16>
    %cst_28 = arith.constant dense<0.000000e+00> : vector<16x384xf32>
    %96 = tpu.matmul %95, %11, %cst_28 {dimension_numbers = #tpu.dot_dimension_numbers<[1], [0], [0], [1], [0, 0, 1, 1], [], []>} : vector<16x128xbf16>, vector<128x384xbf16>, vector<16x384xf32> -> vector<16x384xf32>
    %97 = vector.broadcast %12 : vector<1x384xf32> to vector<16x384xf32>
    %98 = arith.addf %96, %97 : vector<16x384xf32>
    %99 = vector.extract_strided_slice %94 {offsets = [0, 0], sizes = [16, 128], strides = [1, 1]} : vector<16x384xf32> to vector<16x128xf32>
    %100 = vector.extract_strided_slice %98 {offsets = [0, 0], sizes = [16, 128], strides = [1, 1]} : vector<16x384xf32> to vector<16x128xf32>
    %101 = arith.addf %99, %100 : vector<16x128xf32>
    %102 = arith.negf %101 : vector<16x128xf32>
    %103 = math.exp %102 : vector<16x128xf32>
    %cst_29 = arith.constant 1.000000e+00 : f32
    %104 = vector.broadcast %cst_29 : f32 to vector<16x128xf32>
    %105 = arith.addf %104, %103 : vector<16x128xf32>
    %106 = arith.divf %104, %105 : vector<16x128xf32>
    %107 = vector.extract_strided_slice %94 {offsets = [0, 128], sizes = [16, 128], strides = [1, 1]} : vector<16x384xf32> to vector<16x128xf32>
    %108 = vector.extract_strided_slice %98 {offsets = [0, 128], sizes = [16, 128], strides = [1, 1]} : vector<16x384xf32> to vector<16x128xf32>
    %109 = arith.addf %107, %108 : vector<16x128xf32>
    %110 = arith.negf %109 : vector<16x128xf32>
    %111 = math.exp %110 : vector<16x128xf32>
    %cst_30 = arith.constant 1.000000e+00 : f32
    %112 = vector.broadcast %cst_30 : f32 to vector<16x128xf32>
    %113 = arith.addf %112, %111 : vector<16x128xf32>
    %114 = arith.divf %112, %113 : vector<16x128xf32>
    %115 = vector.extract_strided_slice %94 {offsets = [0, 256], sizes = [16, 128], strides = [1, 1]} : vector<16x384xf32> to vector<16x128xf32>
    %116 = vector.extract_strided_slice %98 {offsets = [0, 256], sizes = [16, 128], strides = [1, 1]} : vector<16x384xf32> to vector<16x128xf32>
    %117 = arith.mulf %106, %116 : vector<16x128xf32>
    %118 = arith.addf %115, %117 : vector<16x128xf32>
    %119 = math.tanh %118 : vector<16x128xf32>
    %120 = arith.subf %90, %119 : vector<16x128xf32>
    %121 = arith.mulf %114, %120 : vector<16x128xf32>
    %122 = arith.addf %119, %121 : vector<16x128xf32>
    %123 = arith.addi %13, %c2_i32 : i32
    %124 = vector.broadcast %123 : i32 to vector<16x1xi32>
    %125 = arith.cmpi slt, %124, %10 : vector<16x1xi32>
    %126 = vector.shape_cast %125 : vector<16x1xi1> to vector<16x1xi1>
    %127 = vector.broadcast %126 : vector<16x1xi1> to vector<16x128xi1>
    %128 = arith.select %127, %122, %90 : vector<16x128xi1>, vector<16x128xf32>
    %c3_i32 = arith.constant 3 : i32
    %c16_i32_31 = arith.constant 16 : i32
    %129 = arith.muli %c3_i32, %c16_i32_31 : i32
    %130 = tpu.assume_multiple %129, 16 : i32
    %131 = arith.index_cast %130 : i32 to index
    %c0_32 = arith.constant 0 : index
    %132 = vector.load %arg12[%131, %c0_32] : memref<64x384xf32, #tpu.memory_space<vmem>>, vector<16x384xf32>
    %133 = arith.truncf %128 : vector<16x128xf32> to vector<16x128xbf16>
    %cst_33 = arith.constant dense<0.000000e+00> : vector<16x384xf32>
    %134 = tpu.matmul %133, %11, %cst_33 {dimension_numbers = #tpu.dot_dimension_numbers<[1], [0], [0], [1], [0, 0, 1, 1], [], []>} : vector<16x128xbf16>, vector<128x384xbf16>, vector<16x384xf32> -> vector<16x384xf32>
    %135 = vector.broadcast %12 : vector<1x384xf32> to vector<16x384xf32>
    %136 = arith.addf %134, %135 : vector<16x384xf32>
    %137 = vector.extract_strided_slice %132 {offsets = [0, 0], sizes = [16, 128], strides = [1, 1]} : vector<16x384xf32> to vector<16x128xf32>
    %138 = vector.extract_strided_slice %136 {offsets = [0, 0], sizes = [16, 128], strides = [1, 1]} : vector<16x384xf32> to vector<16x128xf32>
    %139 = arith.addf %137, %138 : vector<16x128xf32>
    %140 = arith.negf %139 : vector<16x128xf32>
    %141 = math.exp %140 : vector<16x128xf32>
    %cst_34 = arith.constant 1.000000e+00 : f32
    %142 = vector.broadcast %cst_34 : f32 to vector<16x128xf32>
    %143 = arith.addf %142, %141 : vector<16x128xf32>
    %144 = arith.divf %142, %143 : vector<16x128xf32>
    %145 = vector.extract_strided_slice %132 {offsets = [0, 128], sizes = [16, 128], strides = [1, 1]} : vector<16x384xf32> to vector<16x128xf32>
    %146 = vector.extract_strided_slice %136 {offsets = [0, 128], sizes = [16, 128], strides = [1, 1]} : vector<16x384xf32> to vector<16x128xf32>
    %147 = arith.addf %145, %146 : vector<16x128xf32>
    %148 = arith.negf %147 : vector<16x128xf32>
    %149 = math.exp %148 : vector<16x128xf32>
    %cst_35 = arith.constant 1.000000e+00 : f32
    %150 = vector.broadcast %cst_35 : f32 to vector<16x128xf32>
    %151 = arith.addf %150, %149 : vector<16x128xf32>
    %152 = arith.divf %150, %151 : vector<16x128xf32>
    %153 = vector.extract_strided_slice %132 {offsets = [0, 256], sizes = [16, 128], strides = [1, 1]} : vector<16x384xf32> to vector<16x128xf32>
    %154 = vector.extract_strided_slice %136 {offsets = [0, 256], sizes = [16, 128], strides = [1, 1]} : vector<16x384xf32> to vector<16x128xf32>
    %155 = arith.mulf %144, %154 : vector<16x128xf32>
    %156 = arith.addf %153, %155 : vector<16x128xf32>
    %157 = math.tanh %156 : vector<16x128xf32>
    %158 = arith.subf %128, %157 : vector<16x128xf32>
    %159 = arith.mulf %152, %158 : vector<16x128xf32>
    %160 = arith.addf %157, %159 : vector<16x128xf32>
    %161 = arith.addi %13, %c3_i32 : i32
    %162 = vector.broadcast %161 : i32 to vector<16x1xi32>
    %163 = arith.cmpi slt, %162, %10 : vector<16x1xi32>
    %164 = vector.shape_cast %163 : vector<16x1xi1> to vector<16x1xi1>
    %165 = vector.broadcast %164 : vector<16x1xi1> to vector<16x128xi1>
    %166 = arith.select %165, %160, %128 : vector<16x128xi1>, vector<16x128xf32>
    %c4_i32_36 = arith.constant 4 : i32
    %c0_37 = arith.constant 0 : index
    %c0_38 = arith.constant 0 : index
    %167 = vector.load %arg13[%c0_37, %c0_38] : memref<16x128xf32, #tpu.memory_space<vmem>>, vector<16x128xf32>
    tpu.vector_store %arg13[%c0_37, %c0_38], %166 {strides = array<i32>} : memref<16x128xf32, #tpu.memory_space<vmem>>, vector<16x128xf32>,
    %c1_i32_39 = arith.constant 1 : i32
    %168 = arith.cmpi eq, %arg0, %c1_i32_39 : i32
    %169 = arith.extui %168 : i1 to i32
    %c0_i32_40 = arith.constant 0 : i32
    %170 = arith.cmpi ne, %169, %c0_i32_40 : i32
    scf.if %170 {
      %c0_41 = arith.constant 0 : index
      %c0_42 = arith.constant 0 : index
      %171 = vector.load %arg13[%c0_41, %c0_42] : memref<16x128xf32, #tpu.memory_space<vmem>>, vector<16x128xf32>
      %172 = arith.truncf %171 : vector<16x128xf32> to vector<16x128xbf16>
      %c0_43 = arith.constant 0 : index
      %c0_44 = arith.constant 0 : index
      %173 = vector.load %arg7[%c0_43, %c0_44] : memref<128x128xbf16, #tpu.memory_space<vmem>>, vector<128x128xbf16>
      %cst_45 = arith.constant dense<0.000000e+00> : vector<16x128xf32>
      %174 = tpu.matmul %172, %173, %cst_45 {dimension_numbers = #tpu.dot_dimension_numbers<[1], [0], [0], [1], [0, 0, 1, 1], [], []>} : vector<16x128xbf16>, vector<128x128xbf16>, vector<16x128xf32> -> vector<16x128xf32>
      %c0_46 = arith.constant 0 : index
      %c0_47 = arith.constant 0 : index
      %175 = vector.load %arg8[%c0_46, %c0_47] : memref<1x128xf32, #tpu.memory_space<vmem>>, vector<1x128xf32>
      %176 = vector.broadcast %175 : vector<1x128xf32> to vector<16x128xf32>
      %177 = arith.addf %174, %176 : vector<16x128xf32>
      %cst_48 = arith.constant 0.000000e+00 : f32
      %178 = vector.broadcast %cst_48 : f32 to vector<16x128xf32>
      %179 = arith.maximumf %177, %178 : vector<16x128xf32>
      %180 = arith.truncf %179 : vector<16x128xf32> to vector<16x128xbf16>
      %c0_49 = arith.constant 0 : index
      %c0_50 = arith.constant 0 : index
      %181 = vector.load %arg9[%c0_49, %c0_50] : memref<128x128xbf16, #tpu.memory_space<vmem>>, vector<128x128xbf16>
      %cst_51 = arith.constant dense<0.000000e+00> : vector<16x128xf32>
      %182 = tpu.matmul %180, %181, %cst_51 {dimension_numbers = #tpu.dot_dimension_numbers<[1], [0], [0], [1], [0, 0, 1, 1], [], []>} : vector<16x128xbf16>, vector<128x128xbf16>, vector<16x128xf32> -> vector<16x128xf32>
      %c0_52 = arith.constant 0 : index
      %c0_53 = arith.constant 0 : index
      %183 = vector.load %arg10[%c0_52, %c0_53] : memref<1x128xf32, #tpu.memory_space<vmem>>, vector<1x128xf32>
      %184 = vector.broadcast %183 : vector<1x128xf32> to vector<16x128xf32>
      %185 = arith.addf %182, %184 : vector<16x128xf32>
      %c0_54 = arith.constant 0 : index
      %c0_55 = arith.constant 0 : index
      %186 = vector.load %arg11[%c0_54, %c0_55] : memref<16x128xf32, #tpu.memory_space<vmem>>, vector<16x128xf32>
      tpu.vector_store %arg11[%c0_54, %c0_55], %185 {strides = array<i32>} : memref<16x128xf32, #tpu.memory_space<vmem>>, vector<16x128xf32>,
    } else {
    }
    return
  }
  func.func @transform_0(%arg0: i32) -> (i32, i32) {
    %c0_i32 = arith.constant 0 : i32
    %c0_i32_0 = arith.constant 0 : i32
    %c0_i32_1 = arith.constant 0 : i32
    return %c0_i32, %c0_i32_0 : i32, i32
  }
  func.func @transform_1(%arg0: i32) -> (i32, i32) {
    %c0_i32 = arith.constant 0 : i32
    %c0_i32_0 = arith.constant 0 : i32
    return %arg0, %c0_i32 : i32, i32
  }
  func.func @transform_2(%arg0: i32) -> (i32, i32) {
    %c0_i32 = arith.constant 0 : i32
    %c0_i32_0 = arith.constant 0 : i32
    %c0_i32_1 = arith.constant 0 : i32
    return %c0_i32, %c0_i32_0 : i32, i32
  }
  func.func @transform_3(%arg0: i32) -> (i32, i32) {
    %c0_i32 = arith.constant 0 : i32
    %c0_i32_0 = arith.constant 0 : i32
    %c0_i32_1 = arith.constant 0 : i32
    return %c0_i32, %c0_i32_0 : i32, i32
  }
  func.func @transform_4(%arg0: i32) -> (i32, i32) {
    %c0_i32 = arith.constant 0 : i32
    %c0_i32_0 = arith.constant 0 : i32
    %c0_i32_1 = arith.constant 0 : i32
    return %c0_i32, %c0_i32_0 : i32, i32
  }
  func.func @transform_5(%arg0: i32) -> (i32, i32) {
    %c0_i32 = arith.constant 0 : i32
    %c0_i32_0 = arith.constant 0 : i32
    %c0_i32_1 = arith.constant 0 : i32
    return %c0_i32, %c0_i32_0 : i32, i32
  }
  func.func @transform_6(%arg0: i32) -> (i32, i32) {
    %c0_i32 = arith.constant 0 : i32
    %c0_i32_0 = arith.constant 0 : i32
    %c0_i32_1 = arith.constant 0 : i32
    return %c0_i32, %c0_i32_0 : i32, i32
  }
  func.func @transform_7(%arg0: i32) -> (i32, i32) {
    %c0_i32 = arith.constant 0 : i32
    %c0_i32_0 = arith.constant 0 : i32
    %c0_i32_1 = arith.constant 0 : i32
    return %c0_i32, %c0_i32_0 : i32, i32
  }
  func.func @transform_8(%arg0: i32) -> (i32, i32) {
    %c0_i32 = arith.constant 0 : i32
    %c0_i32_0 = arith.constant 0 : i32
    %c0_i32_1 = arith.constant 0 : i32
    return %c0_i32, %c0_i32_0 : i32, i32
  }
  func.func @transform_9(%arg0: i32) -> (i32, i32) {
    %c0_i32 = arith.constant 0 : i32
    %c0_i32_0 = arith.constant 0 : i32
    %c0_i32_1 = arith.constant 0 : i32
    return %c0_i32, %c0_i32_0 : i32, i32
  }
  func.func @transform_10(%arg0: i32) -> (i32, i32) {
    %c0_i32 = arith.constant 0 : i32
    %c0_i32_0 = arith.constant 0 : i32
    %c0_i32_1 = arith.constant 0 : i32
    return %c0_i32, %c0_i32_0 : i32, i32
  }
}

</mosaic_0001>

<llo_original>
// kernel: sentiment_network_forward.1
$region0: #{sentiment_network_forward.1}
  #allocation0 [shape = 'u32[]', space=smem, size = 0x4, offset = 0x4, fixed_abs, tag = 'smem constant byte address 0x4 - core index']
  #allocation1 [shape = 'u32[144,128]{1,0:T(1,128)}', space=vmem, size = 0x12000, scoped, tag = 'internal scratch']
  #allocation2 [shape = 'f32[64,384]{1,0:T(8,128)}', space=vmem, size = 0x18000, scoped, tag = 'scratch operand']
  #allocation3 [shape = 'f32[16,128]{1,0:T(8,128)}', space=vmem, size = 0x2000, scoped, tag = 'scratch operand']
  %s0 = inlined_call_operand.vmem [shape: s32[16,1], index: 0, kind: input, shape index: {}]
  %s1 = inlined_call_operand.vmem [shape: bf16[128,16], index: 1, kind: input, shape index: {}]
  %s2 = inlined_call_operand.vmem [shape: bf16[16,384], index: 2, kind: input, shape index: {}]
  %s3 = inlined_call_operand.vmem [shape: bf16[128,384], index: 3, kind: input, shape index: {}]
  %s4 = inlined_call_operand.hbm [shape: f32[1,384], index: 4, kind: input, shape index: {}]
  %s5 = inlined_call_operand.hbm [shape: f32[1,384], index: 5, kind: input, shape index: {}]
  %s6 = inlined_call_operand.hbm [shape: bf16[128,128], index: 6, kind: input, shape index: {}]
  %s7 = inlined_call_operand.vmem [shape: f32[1,128], index: 7, kind: input, shape index: {}]
  %s8 = inlined_call_operand.vmem [shape: bf16[128,128], index: 8, kind: input, shape index: {}]
  %s9 = inlined_call_operand.vmem [shape: f32[1,128], index: 9, kind: input, shape index: {}]
  %s10 = inlined_call_operand.vmem [shape: f32[16,128], index: 10, kind: output, shape index: {}]
  %s11 = sld [smem:[#allocation0]]
  $region93: #{sentiment_network_forward.1} parent=0
    _
  %s13 = ssub.s32 1, %s11
  %s14 = scalar_select 0, %s13, %s11
  $region1: #{sentiment_network_forward.1} parent=0
    #allocation4 [shape = 'u8[1536]{0}', space=vmem, size = 0x800, scoped, tag = 'input window, operand 4, single buffered']
    #allocation5 [shape = 's32[2]{0}', space=sflag, size = 0x8, scoped, tag = 'scoped memory for sentiment_network_forward.1']
    #allocation6 [shape = 'u8[1536]{0}', space=vmem, size = 0x800, scoped, tag = 'input window, operand 5, single buffered']
    #allocation7 [shape = 's32[1]{0}', space=sflag, size = 0x4, scoped, tag = 'scoped memory for sentiment_network_forward.1']
    #allocation8 [shape = 'u8[32768]{0}', space=vmem, size = 0x8000, scoped, tag = 'input window, operand 6, single buffered']
    %15 = vsyncpa [#allocation5], 0
    %16 = vsyncpa [#allocation7], 0
    loop: start=0, step=1, limit=4
    $region2: #{sentiment_network_forward.1} parent=1 // loop_pre_header
      _
    $region3: #{sentiment_network_forward.1} parent=1 // loop_header
      %s18 = sphi 0, %s22
      %p19 = scmp.ge.s32.totalorder %s18, 4
      %s26 = sphi 0, %s26
      %s28 = sphi 0, %s26
      %s29 = sphi 0, %s28
      %s43 = sphi 0, %s29
      %s49 = sphi 0, %s51
      %s52 = sphi 0, %s49
      %s53 = sphi 0, %s52
      %s69 = sphi 0, %s53
      %s73 = sphi 0, %s73
      %s75 = sphi 0, %s73
      %s76 = sphi 0, %s75
      %s90 = sphi 0, %s76
      %s94 = sphi 0, %s94
      %s96 = sphi 0, %s94
      %s97 = sphi 0, %s96
      %s111 = sphi 0, %s97
      %s115 = sphi 0, %s115
      %s117 = sphi 0, %s115
      %s118 = sphi 0, %s117
      %s132 = sphi 0, %s118
      %s136 = sphi 0, %s136
      %s138 = sphi 0, %s136
      %s139 = sphi 0, %s138
      %s153 = sphi 0, %s139
      %s157 = sphi 0, %s157
      %s159 = sphi 0, %s157
      %s160 = sphi 0, %s159
      %s174 = sphi 0, %s160
      %s178 = sphi 0, %s178
      %s180 = sphi 0, %s178
      %s181 = sphi 0, %s180
      %s195 = sphi 0, %s181
      %s199 = sphi 0, %s199
      %s201 = sphi 0, %s199
      %s202 = sphi 0, %s201
      %s216 = sphi 0, %s202
      %s220 = sphi 0, %s220
      %s222 = sphi 0, %s220
      %s223 = sphi 0, %s222
      %s237 = sphi 0, %s223
      %s241 = sphi 0, %s241
      %s243 = sphi 0, %s241
      %s244 = sphi 0, %s243
      %s258 = sphi 0, %s244
    $region4: #{sentiment_network_forward.1} parent=1 // loop_header_branch
      %21 = sbr.rel (%p19) target = $region8
    $region5: #{sentiment_network_forward.1} parent=1 // loop_body
      %s23 = ssub.s32 %s18, 1
      %s24 = ssub.s32 %s18, 2
      %s25 = sadd.s32 %s18, 1
      %s27 = sadd.s32 %s26, 1
      %p30 = scmp.eq.s32.totalorder %s18, 1
      %p31 = scmp.ne.s32.totalorder %s26, %s28
      %p32 = scmp.eq.s32.totalorder %s18, 0
      %p33 = por %p31, %p32
      %p34 = scmp.ne.s32.totalorder %s26, %s28
      %p35 = scmp.eq.s32.totalorder %s23, 1
      %p36 = por %p34, %p35
      %p37 = scmp.ne.s32.totalorder %s28, %s29
      %p38 = scmp.eq.s32.totalorder %s23, 0
      %p39 = por %p37, %p38
      %p40 = scmp.ne.s32.totalorder %s28, %s29
      %p41 = scmp.eq.s32.totalorder %s24, 1
      %p42 = por %p40, %p41
      %p44 = scmp.ne.s32.totalorder %s29, %s43
      %p45 = scmp.eq.s32.totalorder %s24, 0
      %p46 = por %p44, %p45
      %s47 = ssub.s32 %s18, %s25
      %p48 = scmp.eq.s32.totalorder %s47, 0
      %s50 = sadd.s32 %s49, 1
      %s51 = scalar_select %p48, %s49, %s50
      %p54 = pneg %p48
      %p55 = scmp.eq.s32.totalorder %s18, 1
      %p56 = por %p54, %p55
      %p57 = scmp.ne.s32.totalorder %s49, %s52
      %p58 = scmp.eq.s32.totalorder %s18, 0
      %p59 = por %p57, %p58
      %p60 = scmp.ne.s32.totalorder %s49, %s52
      %p61 = scmp.eq.s32.totalorder %s23, 1
      %p62 = por %p60, %p61
      %p63 = scmp.ne.s32.totalorder %s52, %s53
      %p64 = scmp.eq.s32.totalorder %s23, 0
      %p65 = por %p63, %p64
      %p66 = scmp.ne.s32.totalorder %s52, %s53
      %p67 = scmp.eq.s32.totalorder %s24, 1
      %p68 = por %p66, %p67
      %p70 = scmp.ne.s32.totalorder %s53, %s69
      %p71 = scmp.eq.s32.totalorder %s24, 0
      %p72 = por %p70, %p71
      %s74 = sadd.s32 %s73, 1
      %p77 = scmp.eq.s32.totalorder %s18, 1
      %p78 = scmp.ne.s32.totalorder %s73, %s75
      %p79 = scmp.eq.s32.totalorder %s18, 0
      %p80 = por %p78, %p79
      %p81 = scmp.ne.s32.totalorder %s73, %s75
      %p82 = scmp.eq.s32.totalorder %s23, 1
      %p83 = por %p81, %p82
      %p84 = scmp.ne.s32.totalorder %s75, %s76
      %p85 = scmp.eq.s32.totalorder %s23, 0
      %p86 = por %p84, %p85
      %p87 = scmp.ne.s32.totalorder %s75, %s76
      %p88 = scmp.eq.s32.totalorder %s24, 1
      %p89 = por %p87, %p88
      %p91 = scmp.ne.s32.totalorder %s76, %s90
      %p92 = scmp.eq.s32.totalorder %s24, 0
      %p93 = por %p91, %p92
      %s95 = sadd.s32 %s94, 1
      %p98 = scmp.eq.s32.totalorder %s18, 1
      %p99 = scmp.ne.s32.totalorder %s94, %s96
      %p100 = scmp.eq.s32.totalorder %s18, 0
      %p101 = por %p99, %p100
      %p102 = scmp.ne.s32.totalorder %s94, %s96
      %p103 = scmp.eq.s32.totalorder %s23, 1
      %p104 = por %p102, %p103
      %p105 = scmp.ne.s32.totalorder %s96, %s97
      %p106 = scmp.eq.s32.totalorder %s23, 0
      %p107 = por %p105, %p106
      %p108 = scmp.ne.s32.totalorder %s96, %s97
      %p109 = scmp.eq.s32.totalorder %s24, 1
      %p110 = por %p108, %p109
      %p112 = scmp.ne.s32.totalorder %s97, %s111
      %p113 = scmp.eq.s32.totalorder %s24, 0
      %p114 = por %p112, %p113
      %s116 = sadd.s32 %s115, 1
      %p119 = scmp.eq.s32.totalorder %s18, 1
      %p120 = scmp.ne.s32.totalorder %s115, %s117
      %p121 = scmp.eq.s32.totalorder %s18, 0
      %p122 = por %p120, %p121
      %p123 = scmp.ne.s32.totalorder %s115, %s117
      %p124 = scmp.eq.s32.totalorder %s23, 1
      %p125 = por %p123, %p124
      %p126 = scmp.ne.s32.totalorder %s117, %s118
      %p127 = scmp.eq.s32.totalorder %s23, 0
      %p128 = por %p126, %p127
      %p129 = scmp.ne.s32.totalorder %s117, %s118
      %p130 = scmp.eq.s32.totalorder %s24, 1
      %p131 = por %p129, %p130
      %p133 = scmp.ne.s32.totalorder %s118, %s132
      %p134 = scmp.eq.s32.totalorder %s24, 0
      %p135 = por %p133, %p134
      %s137 = sadd.s32 %s136, 1
      %p140 = scmp.eq.s32.totalorder %s18, 1
      %p141 = scmp.ne.s32.totalorder %s136, %s138
      %p142 = scmp.eq.s32.totalorder %s18, 0
      %p143 = por %p141, %p142
      %p144 = scmp.ne.s32.totalorder %s136, %s138
      %p145 = scmp.eq.s32.totalorder %s23, 1
      %p146 = por %p144, %p145
      %p147 = scmp.ne.s32.totalorder %s138, %s139
      %p148 = scmp.eq.s32.totalorder %s23, 0
      %p149 = por %p147, %p148
      %p150 = scmp.ne.s32.totalorder %s138, %s139
      %p151 = scmp.eq.s32.totalorder %s24, 1
      %p152 = por %p150, %p151
      %p154 = scmp.ne.s32.totalorder %s139, %s153
      %p155 = scmp.eq.s32.totalorder %s24, 0
      %p156 = por %p154, %p155
      %s158 = sadd.s32 %s157, 1
      %p161 = scmp.eq.s32.totalorder %s18, 1
      %p162 = scmp.ne.s32.totalorder %s157, %s159
      %p163 = scmp.eq.s32.totalorder %s18, 0
      %p164 = por %p162, %p163
      %p165 = scmp.ne.s32.totalorder %s157, %s159
      %p166 = scmp.eq.s32.totalorder %s23, 1
      %p167 = por %p165, %p166
      %p168 = scmp.ne.s32.totalorder %s159, %s160
      %p169 = scmp.eq.s32.totalorder %s23, 0
      %p170 = por %p168, %p169
      %p171 = scmp.ne.s32.totalorder %s159, %s160
      %p172 = scmp.eq.s32.totalorder %s24, 1
      %p173 = por %p171, %p172
      %p175 = scmp.ne.s32.totalorder %s160, %s174
      %p176 = scmp.eq.s32.totalorder %s24, 0
      %p177 = por %p175, %p176
      %s179 = sadd.s32 %s178, 1
      %p182 = scmp.eq.s32.totalorder %s18, 1
      %p183 = scmp.ne.s32.totalorder %s178, %s180
      %p184 = scmp.eq.s32.totalorder %s18, 0
      %p185 = por %p183, %p184
      %p186 = scmp.ne.s32.totalorder %s178, %s180
      %p187 = scmp.eq.s32.totalorder %s23, 1
      %p188 = por %p186, %p187
      %p189 = scmp.ne.s32.totalorder %s180, %s181
      %p190 = scmp.eq.s32.totalorder %s23, 0
      %p191 = por %p189, %p190
      %p192 = scmp.ne.s32.totalorder %s180, %s181
      %p193 = scmp.eq.s32.totalorder %s24, 1
      %p194 = por %p192, %p193
      %p196 = scmp.ne.s32.totalorder %s181, %s195
      %p197 = scmp.eq.s32.totalorder %s24, 0
      %p198 = por %p196, %p197
      %s200 = sadd.s32 %s199, 1
      %p203 = scmp.eq.s32.totalorder %s18, 1
      %p204 = scmp.ne.s32.totalorder %s199, %s201
      %p205 = scmp.eq.s32.totalorder %s18, 0
      %p206 = por %p204, %p205
      %p207 = scmp.ne.s32.totalorder %s199, %s201
      %p208 = scmp.eq.s32.totalorder %s23, 1
      %p209 = por %p207, %p208
      %p210 = scmp.ne.s32.totalorder %s201, %s202
      %p211 = scmp.eq.s32.totalorder %s23, 0
      %p212 = por %p210, %p211
      %p213 = scmp.ne.s32.totalorder %s201, %s202
      %p214 = scmp.eq.s32.totalorder %s24, 1
      %p215 = por %p213, %p214
      %p217 = scmp.ne.s32.totalorder %s202, %s216
      %p218 = scmp.eq.s32.totalorder %s24, 0
      %p219 = por %p217, %p218
      %s221 = sadd.s32 %s220, 1
      %p224 = scmp.eq.s32.totalorder %s18, 1
      %p225 = scmp.ne.s32.totalorder %s220, %s222
      %p226 = scmp.eq.s32.totalorder %s18, 0
      %p227 = por %p225, %p226
      %p228 = scmp.ne.s32.totalorder %s220, %s222
      %p229 = scmp.eq.s32.totalorder %s23, 1
      %p230 = por %p228, %p229
      %p231 = scmp.ne.s32.totalorder %s222, %s223
      %p232 = scmp.eq.s32.totalorder %s23, 0
      %p233 = por %p231, %p232
      %p234 = scmp.ne.s32.totalorder %s222, %s223
      %p235 = scmp.eq.s32.totalorder %s24, 1
      %p236 = por %p234, %p235
      %p238 = scmp.ne.s32.totalorder %s223, %s237
      %p239 = scmp.eq.s32.totalorder %s24, 0
      %p240 = por %p238, %p239
      %s242 = sadd.s32 %s241, 1
      %p245 = scmp.eq.s32.totalorder %s18, 1
      %p246 = scmp.ne.s32.totalorder %s241, %s243
      %p247 = scmp.eq.s32.totalorder %s18, 0
      %p248 = por %p246, %p247
      %p249 = scmp.ne.s32.totalorder %s241, %s243
      %p250 = scmp.eq.s32.totalorder %s23, 1
      %p251 = por %p249, %p250
      %p252 = scmp.ne.s32.totalorder %s243, %s244
      %p253 = scmp.eq.s32.totalorder %s23, 0
      %p254 = por %p252, %p253
      %p255 = scmp.ne.s32.totalorder %s243, %s244
      %p256 = scmp.eq.s32.totalorder %s24, 1
      %p257 = por %p255, %p256
      %p259 = scmp.ne.s32.totalorder %s244, %s258
      %p260 = scmp.eq.s32.totalorder %s24, 0
      %p261 = por %p259, %p260
      %p262 = scmp.le.s32.totalorder 1, %s18
      %p263 = scmp.lt.s32.totalorder %s18, 3
      %p264 = pnand %p262, %p263
      %p265 = pneg %p264
      // Predicated region
      $region9: #{sentiment_network_forward.1} parent=5 // pred_check
        _
      $region10: #{sentiment_network_forward.1} parent=5 // pred_check_branch
        %267 = sbr.rel (%p264) target = $region12
      $region11: #{sentiment_network_forward.1} parent=5 // pred_region
        %s268 = ssub.s32 %s18, 1
        // Predicated region
        $region13: #{sentiment_network_forward.1} parent=11 // pred_check
          %p269 = pneg %p39
        $region14: #{sentiment_network_forward.1} parent=11 // pred_check_branch
          %271 = sbr.rel (%p269) target = $region16
        $region15: #{sentiment_network_forward.1} parent=11 // pred_region
          _
        $region16: #{sentiment_network_forward.1} parent=11 // pred_fallthru
          _
        // Predicated region
        $region17: #{sentiment_network_forward.1} parent=11 // pred_check
          %p272 = pneg %p86
        $region18: #{sentiment_network_forward.1} parent=11 // pred_check_branch
          %274 = sbr.rel (%p272) target = $region20
        $region19: #{sentiment_network_forward.1} parent=11 // pred_region
          _
        $region20: #{sentiment_network_forward.1} parent=11 // pred_fallthru
          _
        // Predicated region
        $region21: #{sentiment_network_forward.1} parent=11 // pred_check
          %p275 = pneg %p107
        $region22: #{sentiment_network_forward.1} parent=11 // pred_check_branch
          %277 = sbr.rel (%p275) target = $region24
        $region23: #{sentiment_network_forward.1} parent=11 // pred_region
          _
        $region24: #{sentiment_network_forward.1} parent=11 // pred_fallthru
          _
        // Predicated region
        $region25: #{sentiment_network_forward.1} parent=11 // pred_check
          %p278 = pneg %p128
        $region26: #{sentiment_network_forward.1} parent=11 // pred_check_branch
          %280 = sbr.rel (%p278) target = $region28
        $region27: #{sentiment_network_forward.1} parent=11 // pred_region
          %s282 = ssub.s32 48, 48
          %283 = vsyncadd [#allocation5], %s282
          %s285 = sshll.u32 [#allocation4], 4
          %s286 = int_to_ptr.vmem [resolvable:$true] %s285
          %288 = dma.hbm_to_vmem [thread:$0]  %s4, 48, %s286, [#allocation5]
        $region28: #{sentiment_network_forward.1} parent=11 // pred_fallthru
          _
        // Predicated region
        $region29: #{sentiment_network_forward.1} parent=11 // pred_check
          %p289 = pneg %p149
        $region30: #{sentiment_network_forward.1} parent=11 // pred_check_branch
          %291 = sbr.rel (%p289) target = $region32
        $region31: #{sentiment_network_forward.1} parent=11 // pred_region
          %s293 = ssub.s32 48, 48
          %294 = vsyncadd [#allocation7], %s293
          %s296 = sshll.u32 [#allocation6], 4
          %s297 = int_to_ptr.vmem [resolvable:$true] %s296
          %299 = dma.hbm_to_vmem [thread:$0]  %s5, 48, %s297, [#allocation7]
        $region32: #{sentiment_network_forward.1} parent=11 // pred_fallthru
          _
        // Predicated region
        $region33: #{sentiment_network_forward.1} parent=11 // pred_check
          %p300 = pneg %p170
        $region34: #{sentiment_network_forward.1} parent=11 // pred_check_branch
          %302 = sbr.rel (%p300) target = $region36
        $region35: #{sentiment_network_forward.1} parent=11 // pred_region
          %s304 = ssub.s32 1024, 1024
          %305 = vsyncadd [#allocation7], %s304
          %s306 = sshll.u32 [#allocation8], 4
          %s307 = int_to_ptr.vmem [resolvable:$true] %s306
          %312 = dma.hbm_to_vmem [thread:$0]  %s6, 1024, %s307, [#allocation7], 64, 64, 4
        $region36: #{sentiment_network_forward.1} parent=11 // pred_fallthru
          _
        // Predicated region
        $region37: #{sentiment_network_forward.1} parent=11 // pred_check
          %p313 = pneg %p191
        $region38: #{sentiment_network_forward.1} parent=11 // pred_check_branch
          %315 = sbr.rel (%p313) target = $region40
        $region39: #{sentiment_network_forward.1} parent=11 // pred_region
          _
        $region40: #{sentiment_network_forward.1} parent=11 // pred_fallthru
          _
        // Predicated region
        $region41: #{sentiment_network_forward.1} parent=11 // pred_check
          %p316 = pneg %p212
        $region42: #{sentiment_network_forward.1} parent=11 // pred_check_branch
          %318 = sbr.rel (%p316) target = $region44
        $region43: #{sentiment_network_forward.1} parent=11 // pred_region
          _
        $region44: #{sentiment_network_forward.1} parent=11 // pred_fallthru
          _
        // Predicated region
        $region45: #{sentiment_network_forward.1} parent=11 // pred_check
          %p319 = pneg %p233
        $region46: #{sentiment_network_forward.1} parent=11 // pred_check_branch
          %321 = sbr.rel (%p319) target = $region48
        $region47: #{sentiment_network_forward.1} parent=11 // pred_region
          _
        $region48: #{sentiment_network_forward.1} parent=11 // pred_fallthru
          _
      $region12: #{sentiment_network_forward.1} parent=5 // pred_fallthru
        _
      %p322 = scmp.lt.s32.totalorder %s18, 2
      // Predicated region
      $region49: #{sentiment_network_forward.1} parent=5 // pred_check
        %p323 = pneg %p322
      $region50: #{sentiment_network_forward.1} parent=5 // pred_check_branch
        %325 = sbr.rel (%p323) target = $region52
      $region51: #{sentiment_network_forward.1} parent=5 // pred_region
        // Predicated region
        $region53: #{sentiment_network_forward.1} parent=51 // pred_check
          %p326 = pneg %p59
        $region54: #{sentiment_network_forward.1} parent=51 // pred_check_branch
          %328 = sbr.rel (%p326) target = $region56
        $region55: #{sentiment_network_forward.1} parent=51 // pred_region
          %s329 = smul.u32 8, %s18
          %p330 = scmp.lt.s32.totalorder %s329, 15
          %s331 = scalar_select %p330, %s329, 15
          %s332 = smul.addr %s331, 4
          %s333 = scalar_lea.vmem %s1, %s332
          %s334 = smul.u32 8, %s18
        $region56: #{sentiment_network_forward.1} parent=51 // pred_fallthru
          _
      $region52: #{sentiment_network_forward.1} parent=5 // pred_fallthru
        _
      %p335 = scmp.le.s32.totalorder 1, %s18
      %p336 = scmp.lt.s32.totalorder %s18, 3
      %p337 = pnand %p335, %p336
      %p338 = pneg %p337
      // Predicated region
      $region57: #{sentiment_network_forward.1} parent=5 // pred_check
        _
      $region58: #{sentiment_network_forward.1} parent=5 // pred_check_branch
        %340 = sbr.rel (%p337) target = $region60
      $region59: #{sentiment_network_forward.1} parent=5 // pred_region
        %s341 = ssub.s32 %s18, 1
        // Predicated region
        $region61: #{sentiment_network_forward.1} parent=59 // pred_check
          %p342 = pneg %p128
        $region62: #{sentiment_network_forward.1} parent=59 // pred_check_branch
          %344 = sbr.rel (%p342) target = $region64
        $region63: #{sentiment_network_forward.1} parent=59 // pred_region
          %345 = dma.done [#allocation5], 48
        $region64: #{sentiment_network_forward.1} parent=59 // pred_fallthru
          _
        // Predicated region
        $region65: #{sentiment_network_forward.1} parent=59 // pred_check
          %p346 = pneg %p149
        $region66: #{sentiment_network_forward.1} parent=59 // pred_check_branch
          %348 = sbr.rel (%p346) target = $region68
        $region67: #{sentiment_network_forward.1} parent=59 // pred_region
          %349 = dma.done [#allocation7], 48
        $region68: #{sentiment_network_forward.1} parent=59 // pred_fallthru
          _
        // Predicated region
        $region69: #{sentiment_network_forward.1} parent=59 // pred_check
          %p350 = pneg %p170
        $region70: #{sentiment_network_forward.1} parent=59 // pred_check_branch
          %352 = sbr.rel (%p350) target = $region72
        $region71: #{sentiment_network_forward.1} parent=59 // pred_region
          %353 = dma.done [#allocation7], 1024
        $region72: #{sentiment_network_forward.1} parent=59 // pred_fallthru
          _
        %p354 = pneg %p39
        %p355 = pneg %p36
        %s356 = smul.u32 8, %s23
        %p357 = scmp.lt.s32.totalorder %s356, 15
        %s358 = scalar_select %p357, %s356, 15
        %s359 = smul.addr %s358, 4
        %s360 = scalar_lea.vmem %s1, %s359
        %p361 = pneg %p65
        %p362 = pneg %p62
        %p363 = pneg %p86
        %p364 = pneg %p83
        %p365 = pneg %p107
        %p366 = pneg %p104
        %p367 = pneg %p128
        %p368 = pneg %p125
        %p369 = pneg %p149
        %p370 = pneg %p146
        %p371 = pneg %p170
        %p372 = pneg %p167
        %p373 = pneg %p191
        %p374 = pneg %p188
        %p375 = pneg %p212
        %p376 = pneg %p209
        %p377 = pneg %p233
        %p378 = pneg %p230
        %p379 = pneg %p254
        %p380 = pneg %p251
        %s381 = smul.u32 8, %s23
        %p382 = scmp.lt.s32.totalorder %s381, 15
        %s383 = scalar_select %p382, %s381, 15
        %s384 = smul.addr %s383, 4
        %s385 = scalar_lea.vmem %s1, %s384
        %s386 = smul.u32 8, %s23
        %p388 = scmp.eq.s32.totalorder %s23, 0
        // Predicated region
        $region73: #{sentiment_network_forward.1} parent=59 // pred_check
          %p389 = pneg %p388
        $region74: #{sentiment_network_forward.1} parent=59 // pred_check_branch
          %391 = sbr.rel (%p389) target = $region76
        $region75: #{sentiment_network_forward.1} parent=59 // pred_region
          %392 = vst [vmem:[#allocation3] sm:$0xff] 0.0
          %393 = vst [vmem:[#allocation3 + $0x8] sm:$0xff] 0.0
        $region76: #{sentiment_network_forward.1} parent=59 // pred_fallthru
          _
        %v394 = vld [vmem:[%s385] sm:$0xf]
        %v395 = vld [vmem:[%s385 + $0x4] sm:$0xf]
        %v396 = vld [vmem:[%s385 + $0x8] sm:$0xf]
        %v397 = vld [vmem:[%s385 + $0xc] sm:$0xf]
        %v398 = vld [vmem:[%s385 + $0x10] sm:$0xf]
        %v399 = vld [vmem:[%s385 + $0x14] sm:$0xf]
        %v400 = vld [vmem:[%s385 + $0x18] sm:$0xf]
        %v401 = vld [vmem:[%s385 + $0x1c] sm:$0xf]
        %v402 = vld [vmem:[%s2] sm:$0xff]
        %v403 = vld [vmem:[%s2 + $0x8] sm:$0xf]
        %v404 = vld [vmem:[%s2 + $0xc] sm:$0xff]
        %v405 = vld [vmem:[%s2 + $0x14] sm:$0xf]
        %v406 = vld [vmem:[#allocation4] sm:$0x7]
        %v408 = vlaneseq
        %v409 = vshrl.u32 %v408, 7
        %v410 = vsub.s32 0, %v409
        %v411 = vrot.slane %v406, %v410
        %v412 = vlaneseq
        %v413 = vshrl.u32 %v412, 7
        %v414 = vsub.s32 1, %v413
        %v415 = vrot.slane %v406, %v414
        %v416 = vlaneseq
        %v417 = vshrl.u32 %v416, 7
        %v418 = vsub.s32 2, %v417
        %v419 = vrot.slane %v406, %v418
        %v431 = vunpack.c.l.b16 %v394
        %v432 = vunpack.c.l.b16 %v395
        %v433 = vunpack.c.l.b16 %v396
        %v434 = vunpack.c.l.b16 %v397
        %v435 = vunpack.c.l.b16 %v398
        %v436 = vunpack.c.l.b16 %v399
        %v437 = vunpack.c.l.b16 %v400
        %v438 = vunpack.c.l.b16 %v401
        %v439 = vpack.c.b16 %v432, %v431
        %v440 = vpack.c.b16 %v434, %v433
        %v441 = vpack.c.b16 %v436, %v435
        %v442 = vpack.c.b16 %v438, %v437
        %v447 = vunpack.c.l.b16 %v402
        %v448 = vunpack.c.h.b16 %v402
        %v449 = vunpack.c.l.b16 %v403
        %v450 = vunpack.c.l.b16 %v404
        %v451 = vunpack.c.h.b16 %v404
        %v452 = vunpack.c.l.b16 %v405
        %v453 = vpack.c.b16 %v450, %v447
        %v454 = vpack.c.b16 %v451, %v448
        %v455 = vpack.c.b16 %v452, %v449
        %vm459 = vcmask 130048
        %v461 = vsel %vm459, %v439, 0
        %v464 = vsel %vm459, %v440, 0
        %v467 = vsel %vm459, %v441, 0
        %v470 = vsel %vm459, %v442, 0
        %472 = vmatprep.subr.bf16.mxu0 0
        %473 = vmatpush1.bf16.msra.mxu0 0
        %474 = vmatprep.subr.bf16.mxu0 0
        %475 = vmatpush1.bf16.msra.mxu0 0
        %476 = vmatprep.subr.bf16.mxu0 0
        %477 = vmatpush1.bf16.msra.mxu0 0
        %478 = vmatprep.subr.bf16.mxu0 0
        %479 = vmatpush1.bf16.msra.mxu0 0
        %480 = vmatprep.subr.bf16.mxu0 0
        %481 = vmatpush1.bf16.msra.mxu0 0
        %482 = vmatprep.subr.bf16.mxu0 0
        %483 = vmatpush1.bf16.msra.mxu0 0
        %484 = vmatprep.subr.bf16.mxu0 0
        %485 = vmatpush1.bf16.msra.mxu0 0
        %486 = vmatprep.subr.bf16.mxu0 %v454
        %487 = vmatpush1.bf16.msra.mxu0 %v453
        %488 = vmatprep.subr.bf16.mxu0 0
        %489 = vmatpush2.bf16.msra.mxu0 0
        %490 = vmatprep.subr.bf16.mxu0 0
        %491 = vmatpush2.bf16.msra.mxu0 0
        %492 = vmatprep.subr.bf16.mxu0 0
        %493 = vmatpush2.bf16.msra.mxu0 0
        %494 = vmatprep.subr.bf16.mxu0 0
        %495 = vmatpush2.bf16.msra.mxu0 0
        %496 = vmatprep.subr.bf16.mxu0 0
        %497 = vmatpush2.bf16.msra.mxu0 0
        %498 = vmatprep.subr.bf16.mxu0 0
        %499 = vmatpush2.bf16.msra.mxu0 0
        %500 = vmatprep.subr.bf16.mxu0 0
        %501 = vmatpush2.bf16.msra.mxu0 0
        %502 = vmatprep.subr.bf16.mxu0 0
        %503 = vmatpush2.bf16.msra.mxu0 0
        %504 = vmatprep.mubr.bf16.mxu0 0
        %505 = vmatmul.mubr.bf16.gmra.mxu0 %v461
        %v506 = vpop.f32.mrf.mxu0
        %v507 = vadd.f32 %v411, %v506
        %v508 = vpop.f32.mrf.mxu0
        %v509 = vadd.f32 %v415, %v508
        %v510 = vpop.f32.mrf.mxu0
        %v511 = vadd.f32 %v411, %v510
        %v512 = vpop.f32.mrf.mxu0
        %v513 = vadd.f32 %v415, %v512
        %514 = vmatprep.mubr.bf16.mxu0 0
        %515 = vmatmul.mubr.bf16.gmra.mxu0 %v464
        %v516 = vpop.f32.mrf.mxu0
        %v517 = vadd.f32 %v411, %v516
        %v518 = vpop.f32.mrf.mxu0
        %v519 = vadd.f32 %v415, %v518
        %v520 = vpop.f32.mrf.mxu0
        %v521 = vadd.f32 %v411, %v520
        %v522 = vpop.f32.mrf.mxu0
        %v523 = vadd.f32 %v415, %v522
        %524 = vmatprep.mubr.bf16.mxu0 0
        %525 = vmatmul.mubr.bf16.gmra.mxu0 %v467
        %v526 = vpop.f32.mrf.mxu0
        %v527 = vadd.f32 %v411, %v526
        %v528 = vpop.f32.mrf.mxu0
        %v529 = vadd.f32 %v415, %v528
        %v530 = vpop.f32.mrf.mxu0
        %v531 = vadd.f32 %v411, %v530
        %v532 = vpop.f32.mrf.mxu0
        %v533 = vadd.f32 %v415, %v532
        %534 = vmatprep.mubr.bf16.mxu0 0
        %535 = vmatmul.mubr.bf16.gmra.mxu0 %v470
        %v536 = vpop.f32.mrf.mxu0
        %v537 = vadd.f32 %v411, %v536
        %v538 = vpop.f32.mrf.mxu0
        %v539 = vadd.f32 %v415, %v538
        %v540 = vpop.f32.mrf.mxu0
        %v541 = vadd.f32 %v411, %v540
        %v542 = vpop.f32.mrf.mxu0
        %v543 = vadd.f32 %v415, %v542
        %544 = vdwg.mxu0
        %545 = vmatprep.subr.bf16.mxu0 0
        %546 = vmatpush1.bf16.msra.mxu0 0
        %547 = vmatprep.subr.bf16.mxu0 0
        %548 = vmatpush1.bf16.msra.mxu0 0
        %549 = vmatprep.subr.bf16.mxu0 0
        %550 = vmatpush1.bf16.msra.mxu0 0
        %551 = vmatprep.subr.bf16.mxu0 0
        %552 = vmatpush1.bf16.msra.mxu0 0
        %553 = vmatprep.subr.bf16.mxu0 0
        %554 = vmatpush1.bf16.msra.mxu0 0
        %555 = vmatprep.subr.bf16.mxu0 0
        %556 = vmatpush1.bf16.msra.mxu0 0
        %557 = vmatprep.subr.bf16.mxu0 0
        %558 = vmatpush1.bf16.msra.mxu0 0
        %559 = vmatprep.subr.bf16.mxu0 0
        %560 = vmatpush1.bf16.msra.mxu0 %v455
        %561 = vmatprep.subr.bf16.mxu0 0
        %562 = vmatpush2.bf16.msra.mxu0 0
        %563 = vmatprep.subr.bf16.mxu0 0
        %564 = vmatpush2.bf16.msra.mxu0 0
        %565 = vmatprep.subr.bf16.mxu0 0
        %566 = vmatpush2.bf16.msra.mxu0 0
        %567 = vmatprep.subr.bf16.mxu0 0
        %568 = vmatpush2.bf16.msra.mxu0 0
        %569 = vmatprep.subr.bf16.mxu0 0
        %570 = vmatpush2.bf16.msra.mxu0 0
        %571 = vmatprep.subr.bf16.mxu0 0
        %572 = vmatpush2.bf16.msra.mxu0 0
        %573 = vmatprep.subr.bf16.mxu0 0
        %574 = vmatpush2.bf16.msra.mxu0 0
        %575 = vmatprep.subr.bf16.mxu0 0
        %576 = vmatpush2.bf16.msra.mxu0 0
        %577 = vmatprep.mubr.bf16.mxu0 0
        %578 = vmatmul.mubr.bf16.gmra.mxu0 %v461
        %v579 = vpop.f32.mrf.mxu0
        %v580 = vadd.f32 %v419, %v579
        %v581 = vpop.f32.mrf.mxu0
        %v582 = vpop.f32.mrf.mxu0
        %v583 = vadd.f32 %v419, %v582
        %v584 = vpop.f32.mrf.mxu0
        %585 = vmatprep.mubr.bf16.mxu0 0
        %586 = vmatmul.mubr.bf16.gmra.mxu0 %v464
        %v587 = vpop.f32.mrf.mxu0
        %v588 = vadd.f32 %v419, %v587
        %v589 = vpop.f32.mrf.mxu0
        %v590 = vpop.f32.mrf.mxu0
        %v591 = vadd.f32 %v419, %v590
        %v592 = vpop.f32.mrf.mxu0
        %593 = vmatprep.mubr.bf16.mxu0 0
        %594 = vmatmul.mubr.bf16.gmra.mxu0 %v467
        %v595 = vpop.f32.mrf.mxu0
        %v596 = vadd.f32 %v419, %v595
        %v597 = vpop.f32.mrf.mxu0
        %v598 = vpop.f32.mrf.mxu0
        %v599 = vadd.f32 %v419, %v598
        %v600 = vpop.f32.mrf.mxu0
        %601 = vmatprep.mubr.bf16.mxu0 0
        %602 = vmatmul.mubr.bf16.gmra.mxu0 %v470
        %v603 = vpop.f32.mrf.mxu0
        %v604 = vadd.f32 %v419, %v603
        %v605 = vpop.f32.mrf.mxu0
        %v606 = vpop.f32.mrf.mxu0
        %v607 = vadd.f32 %v419, %v606
        %v608 = vpop.f32.mrf.mxu0
        %609 = vdwg.mxu0
        %610 = vst [vmem:[#allocation2] sm:$0xff] %v507
        %611 = vst [vmem:[#allocation2 + $0x8] sm:$0xff] %v509
        %612 = vst [vmem:[#allocation2 + $0x10] sm:$0xff] %v580
        %613 = vst [vmem:[#allocation2 + $0x18] sm:$0xff] %v511
        %614 = vst [vmem:[#allocation2 + $0x20] sm:$0xff] %v513
        %615 = vst [vmem:[#allocation2 + $0x28] sm:$0xff] %v583
        %616 = vst [vmem:[#allocation2 + $0x30] sm:$0xff] %v517
        %617 = vst [vmem:[#allocation2 + $0x38] sm:$0xff] %v519
        %618 = vst [vmem:[#allocation2 + $0x40] sm:$0xff] %v588
        %619 = vst [vmem:[#allocation2 + $0x48] sm:$0xff] %v521
        %620 = vst [vmem:[#allocation2 + $0x50] sm:$0xff] %v523
        %621 = vst [vmem:[#allocation2 + $0x58] sm:$0xff] %v591
        %622 = vst [vmem:[#allocation2 + $0x60] sm:$0xff] %v527
        %623 = vst [vmem:[#allocation2 + $0x68] sm:$0xff] %v529
        %624 = vst [vmem:[#allocation2 + $0x70] sm:$0xff] %v596
        %625 = vst [vmem:[#allocation2 + $0x78] sm:$0xff] %v531
        %626 = vst [vmem:[#allocation2 + $0x80] sm:$0xff] %v533
        %627 = vst [vmem:[#allocation2 + $0x88] sm:$0xff] %v599
        %628 = vst [vmem:[#allocation2 + $0x90] sm:$0xff] %v537
        %629 = vst [vmem:[#allocation2 + $0x98] sm:$0xff] %v539
        %630 = vst [vmem:[#allocation2 + $0xa0] sm:$0xff] %v604
        %631 = vst [vmem:[#allocation2 + $0xa8] sm:$0xff] %v541
        %632 = vst [vmem:[#allocation2 + $0xb0] sm:$0xff] %v543
        %633 = vst [vmem:[#allocation2 + $0xb8] sm:$0xff] %v607
        %v634 = vld [vmem:[%s0] sm:$0xff]
        %v635 = vld [vmem:[%s0 + $0x8] sm:$0xff]
        %v636 = vld [vmem:[%s3] sm:$0xff]
        %v637 = vld [vmem:[%s3 + $0x8] sm:$0xf]
        %v638 = vld [vmem:[%s3 + $0xc] sm:$0xff]
        %v639 = vld [vmem:[%s3 + $0x14] sm:$0xf]
        %v640 = vld [vmem:[%s3 + $0x18] sm:$0xff]
        %v641 = vld [vmem:[%s3 + $0x20] sm:$0xf]
        %v642 = vld [vmem:[%s3 + $0x24] sm:$0xff]
        %v643 = vld [vmem:[%s3 + $0x2c] sm:$0xf]
        %v644 = vld [vmem:[%s3 + $0x30] sm:$0xff]
        %v645 = vld [vmem:[%s3 + $0x38] sm:$0xf]
        %v646 = vld [vmem:[%s3 + $0x3c] sm:$0xff]
        %v647 = vld [vmem:[%s3 + $0x44] sm:$0xf]
        %v648 = vld [vmem:[%s3 + $0x48] sm:$0xff]
        %v649 = vld [vmem:[%s3 + $0x50] sm:$0xf]
        %v650 = vld [vmem:[%s3 + $0x54] sm:$0xff]
        %v651 = vld [vmem:[%s3 + $0x5c] sm:$0xf]
        %v652 = vld [vmem:[%s3 + $0x60] sm:$0xff]
        %v653 = vld [vmem:[%s3 + $0x68] sm:$0xf]
        %v654 = vld [vmem:[%s3 + $0x6c] sm:$0xff]
        %v655 = vld [vmem:[%s3 + $0x74] sm:$0xf]
        %v656 = vld [vmem:[%s3 + $0x78] sm:$0xff]
        %v657 = vld [vmem:[%s3 + $0x80] sm:$0xf]
        %v658 = vld [vmem:[%s3 + $0x84] sm:$0xff]
        %v659 = vld [vmem:[%s3 + $0x8c] sm:$0xf]
        %v660 = vld [vmem:[%s3 + $0x90] sm:$0xff]
        %v661 = vld [vmem:[%s3 + $0x98] sm:$0xf]
        %v662 = vld [vmem:[%s3 + $0x9c] sm:$0xff]
        %v663 = vld [vmem:[%s3 + $0xa4] sm:$0xf]
        %v664 = vld [vmem:[%s3 + $0xa8] sm:$0xff]
        %v665 = vld [vmem:[%s3 + $0xb0] sm:$0xf]
        %v666 = vld [vmem:[%s3 + $0xb4] sm:$0xff]
        %v667 = vld [vmem:[%s3 + $0xbc] sm:$0xf]
        %v668 = vld [vmem:[#allocation6] sm:$0x7]
        %s669 = smul.u32 %s23, 4
        %v670 = vld [vmem:[#allocation3] sm:$0xff]
        %v671 = vld [vmem:[#allocation3 + $0x8] sm:$0xff]
        %s672 = smul.u32 0, 3
        %s673 = smul.addr %s672, 8
        %s674 = scalar_lea.vmem [#allocation2], %s673
        %v675 = vld [vmem:[%s674] sm:$0xff]
        %v676 = vld [vmem:[%s674 + $0x8] sm:$0xff]
        %v677 = vld [vmem:[%s674 + $0x10] sm:$0xff]
        %v678 = vld [vmem:[%s674 + $0x18] sm:$0xff]
        %v679 = vld [vmem:[%s674 + $0x20] sm:$0xff]
        %v680 = vld [vmem:[%s674 + $0x28] sm:$0xff]
        %v681 = vpack.c.bf16 %v671, %v670
        %v683 = vlaneseq
        %v684 = vshrl.u32 %v683, 7
        %v685 = vsub.s32 0, %v684
        %v686 = vrot.slane %v668, %v685
        %v687 = vlaneseq
        %v688 = vshrl.u32 %v687, 7
        %v689 = vsub.s32 1, %v688
        %v690 = vrot.slane %v668, %v689
        %v691 = vlaneseq
        %v692 = vshrl.u32 %v691, 7
        %v693 = vsub.s32 2, %v692
        %v694 = vrot.slane %v668, %v693
        %v730 = vunpack.c.l.b16 %v636
        %v731 = vunpack.c.h.b16 %v636
        %v732 = vunpack.c.l.b16 %v637
        %v733 = vunpack.c.l.b16 %v638
        %v734 = vunpack.c.h.b16 %v638
        %v735 = vunpack.c.l.b16 %v639
        %v736 = vunpack.c.l.b16 %v640
        %v737 = vunpack.c.h.b16 %v640
        %v738 = vunpack.c.l.b16 %v641
        %v739 = vunpack.c.l.b16 %v642
        %v740 = vunpack.c.h.b16 %v642
        %v741 = vunpack.c.l.b16 %v643
        %v742 = vunpack.c.l.b16 %v644
        %v743 = vunpack.c.h.b16 %v644
        %v744 = vunpack.c.l.b16 %v645
        %v745 = vunpack.c.l.b16 %v646
        %v746 = vunpack.c.h.b16 %v646
        %v747 = vunpack.c.l.b16 %v647
        %v748 = vunpack.c.l.b16 %v648
        %v749 = vunpack.c.h.b16 %v648
        %v750 = vunpack.c.l.b16 %v649
        %v751 = vunpack.c.l.b16 %v650
        %v752 = vunpack.c.h.b16 %v650
        %v753 = vunpack.c.l.b16 %v651
        %v754 = vunpack.c.l.b16 %v652
        %v755 = vunpack.c.h.b16 %v652
        %v756 = vunpack.c.l.b16 %v653
        %v757 = vunpack.c.l.b16 %v654
        %v758 = vunpack.c.h.b16 %v654
        %v759 = vunpack.c.l.b16 %v655
        %v760 = vunpack.c.l.b16 %v656
        %v761 = vunpack.c.h.b16 %v656
        %v762 = vunpack.c.l.b16 %v657
        %v763 = vunpack.c.l.b16 %v658
        %v764 = vunpack.c.h.b16 %v658
        %v765 = vunpack.c.l.b16 %v659
        %v766 = vunpack.c.l.b16 %v660
        %v767 = vunpack.c.h.b16 %v660
        %v768 = vunpack.c.l.b16 %v661
        %v769 = vunpack.c.l.b16 %v662
        %v770 = vunpack.c.h.b16 %v662
        %v771 = vunpack.c.l.b16 %v663
        %v772 = vunpack.c.l.b16 %v664
        %v773 = vunpack.c.h.b16 %v664
        %v774 = vunpack.c.l.b16 %v665
        %v775 = vunpack.c.l.b16 %v666
        %v776 = vunpack.c.h.b16 %v666
        %v777 = vunpack.c.l.b16 %v667
        %v778 = vpack.c.b16 %v733, %v730
        %v779 = vpack.c.b16 %v734, %v731
        %v780 = vpack.c.b16 %v735, %v732
        %v781 = vpack.c.b16 %v739, %v736
        %v782 = vpack.c.b16 %v740, %v737
        %v783 = vpack.c.b16 %v741, %v738
        %v784 = vpack.c.b16 %v745, %v742
        %v785 = vpack.c.b16 %v746, %v743
        %v786 = vpack.c.b16 %v747, %v744
        %v787 = vpack.c.b16 %v751, %v748
        %v788 = vpack.c.b16 %v752, %v749
        %v789 = vpack.c.b16 %v753, %v750
        %v790 = vpack.c.b16 %v757, %v754
        %v791 = vpack.c.b16 %v758, %v755
        %v792 = vpack.c.b16 %v759, %v756
        %v793 = vpack.c.b16 %v763, %v760
        %v794 = vpack.c.b16 %v764, %v761
        %v795 = vpack.c.b16 %v765, %v762
        %v796 = vpack.c.b16 %v769, %v766
        %v797 = vpack.c.b16 %v770, %v767
        %v798 = vpack.c.b16 %v771, %v768
        %v799 = vpack.c.b16 %v775, %v772
        %v800 = vpack.c.b16 %v776, %v773
        %v801 = vpack.c.b16 %v777, %v774
        %826 = vmatprep.subr.bf16.mxu0 %v800
        %827 = vmatpush1.bf16.msra.mxu0 %v799
        %828 = vmatprep.subr.bf16.mxu0 %v797
        %829 = vmatpush1.bf16.msra.mxu0 %v796
        %830 = vmatprep.subr.bf16.mxu0 %v794
        %831 = vmatpush1.bf16.msra.mxu0 %v793
        %832 = vmatprep.subr.bf16.mxu0 %v791
        %833 = vmatpush1.bf16.msra.mxu0 %v790
        %834 = vmatprep.subr.bf16.mxu0 %v788
        %835 = vmatpush1.bf16.msra.mxu0 %v787
        %836 = vmatprep.subr.bf16.mxu0 %v785
        %837 = vmatpush1.bf16.msra.mxu0 %v784
        %838 = vmatprep.subr.bf16.mxu0 %v782
        %839 = vmatpush1.bf16.msra.mxu0 %v781
        %840 = vmatprep.subr.bf16.mxu0 %v779
        %841 = vmatpush1.bf16.msra.mxu0 %v778
        %842 = vmatprep.subr.bf16.mxu0 0
        %843 = vmatpush2.bf16.msra.mxu0 0
        %844 = vmatprep.subr.bf16.mxu0 0
        %845 = vmatpush2.bf16.msra.mxu0 0
        %846 = vmatprep.subr.bf16.mxu0 0
        %847 = vmatpush2.bf16.msra.mxu0 0
        %848 = vmatprep.subr.bf16.mxu0 0
        %849 = vmatpush2.bf16.msra.mxu0 0
        %850 = vmatprep.subr.bf16.mxu0 0
        %851 = vmatpush2.bf16.msra.mxu0 0
        %852 = vmatprep.subr.bf16.mxu0 0
        %853 = vmatpush2.bf16.msra.mxu0 0
        %854 = vmatprep.subr.bf16.mxu0 0
        %855 = vmatpush2.bf16.msra.mxu0 0
        %856 = vmatprep.subr.bf16.mxu0 0
        %857 = vmatpush2.bf16.msra.mxu0 0
        %858 = vmatprep.mubr.bf16.mxu0 0
        %859 = vmatmul.mubr.bf16.gmra.mxu0 %v681
        %v860 = vpop.f32.mrf.mxu0
        %v861 = vadd.f32 %v686, %v860
        %v862 = vpop.f32.mrf.mxu0
        %v863 = vadd.f32 %v690, %v862
        %v864 = vpop.f32.mrf.mxu0
        %v865 = vadd.f32 %v686, %v864
        %v866 = vpop.f32.mrf.mxu0
        %v867 = vadd.f32 %v690, %v866
        %868 = vdwg.mxu0
        %869 = vmatprep.subr.bf16.mxu0 0
        %870 = vmatpush1.bf16.msra.mxu0 %v801
        %871 = vmatprep.subr.bf16.mxu0 0
        %872 = vmatpush1.bf16.msra.mxu0 %v798
        %873 = vmatprep.subr.bf16.mxu0 0
        %874 = vmatpush1.bf16.msra.mxu0 %v795
        %875 = vmatprep.subr.bf16.mxu0 0
        %876 = vmatpush1.bf16.msra.mxu0 %v792
        %877 = vmatprep.subr.bf16.mxu0 0
        %878 = vmatpush1.bf16.msra.mxu0 %v789
        %879 = vmatprep.subr.bf16.mxu0 0
        %880 = vmatpush1.bf16.msra.mxu0 %v786
        %881 = vmatprep.subr.bf16.mxu0 0
        %882 = vmatpush1.bf16.msra.mxu0 %v783
        %883 = vmatprep.subr.bf16.mxu0 0
        %884 = vmatpush1.bf16.msra.mxu0 %v780
        %885 = vmatprep.subr.bf16.mxu0 0
        %886 = vmatpush2.bf16.msra.mxu0 0
        %887 = vmatprep.subr.bf16.mxu0 0
        %888 = vmatpush2.bf16.msra.mxu0 0
        %889 = vmatprep.subr.bf16.mxu0 0
        %890 = vmatpush2.bf16.msra.mxu0 0
        %891 = vmatprep.subr.bf16.mxu0 0
        %892 = vmatpush2.bf16.msra.mxu0 0
        %893 = vmatprep.subr.bf16.mxu0 0
        %894 = vmatpush2.bf16.msra.mxu0 0
        %895 = vmatprep.subr.bf16.mxu0 0
        %896 = vmatpush2.bf16.msra.mxu0 0
        %897 = vmatprep.subr.bf16.mxu0 0
        %898 = vmatpush2.bf16.msra.mxu0 0
        %899 = vmatprep.subr.bf16.mxu0 0
        %900 = vmatpush2.bf16.msra.mxu0 0
        %901 = vmatprep.mubr.bf16.mxu0 0
        %902 = vmatmul.mubr.bf16.gmra.mxu0 %v681
        %v903 = vpop.f32.mrf.mxu0
        %v904 = vadd.f32 %v694, %v903
        %v905 = vpop.f32.mrf.mxu0
        %v906 = vpop.f32.mrf.mxu0
        %v907 = vadd.f32 %v694, %v906
        %v908 = vpop.f32.mrf.mxu0
        %909 = vdwg.mxu0
        %v910 = vadd.f32 %v675, %v861
        %v911 = vadd.f32 %v678, %v865
        %v912 = vxor.u32 %v910, 2147483648
        %v913 = vxor.u32 %v911, 2147483648
        %v914 = vmul.f32 %v912, 1.442695
        %v915 = vpow.pop %v914
        %v916 = vmul.f32 %v913, 1.442695
        %v917 = vpow.pop %v916
        %v918 = vadd.f32 %v915, 1.0
        %v919 = vadd.f32 %v917, 1.0
        %v920 = vrcp.pop %v918
        %v921 = vmul.f32 1.0, %v920
        %v922 = vrcp.pop %v919
        %v923 = vmul.f32 1.0, %v922
        %v924 = vadd.f32 %v676, %v863
        %v925 = vadd.f32 %v679, %v867
        %v926 = vxor.u32 %v924, 2147483648
        %v927 = vxor.u32 %v925, 2147483648
        %v928 = vmul.f32 %v926, 1.442695
        %v929 = vpow.pop %v928
        %v930 = vmul.f32 %v927, 1.442695
        %v931 = vpow.pop %v930
        %v932 = vadd.f32 %v929, 1.0
        %v933 = vadd.f32 %v931, 1.0
        %v934 = vrcp.pop %v932
        %v935 = vmul.f32 1.0, %v934
        %v936 = vrcp.pop %v933
        %v937 = vmul.f32 1.0, %v936
        %v938 = vmul.f32 %v921, %v904
        %v939 = vmul.f32 %v923, %v907
        %v940 = vadd.f32 %v677, %v938
        %v941 = vadd.f32 %v680, %v939
        %v942 = vtanh.pop %v940
        %v943 = vtanh.pop %v941
        %v944 = vsub.f32 %v670, %v942
        %v945 = vsub.f32 %v671, %v943
        %v946 = vmul.f32 %v935, %v944
        %v947 = vmul.f32 %v937, %v945
        %v948 = vadd.f32 %v942, %v946
        %v949 = vadd.f32 %v943, %v947
        %v950 = vstv %s669
        %vm951 = vcmp.lt.s32.totalorder %v950, %v634
        %vm952 = vcmp.lt.s32.totalorder %v950, %v635
        %v953 = vsel %vm951, 1, 0
        %v954 = vsel %vm952, 1, 0
        %955 = vset.pattern.permute.xlu0 0
        %956 = vperm.xlu0 %955, %v953
        %v957 = vpop.permute.xlu0 %956
        %958 = vset.pattern.permute.xlu0 0
        %959 = vperm.xlu0 %958, %v954
        %v960 = vpop.permute.xlu0 %959
        %vm961 = vcmp.eq.s32.totalorder %v957, 1
        %vm962 = vcmp.eq.s32.totalorder %v960, 1
        %v963 = vsel %vm961, %v948, %v670
        %v964 = vsel %vm962, %v949, %v671
        %s965 = smul.u32 2, 3
        %s966 = smul.addr %s965, 8
        %s967 = scalar_lea.vmem [#allocation2], %s966
        %v968 = vld [vmem:[%s967] sm:$0xff]
        %v969 = vld [vmem:[%s967 + $0x8] sm:$0xff]
        %v970 = vld [vmem:[%s967 + $0x10] sm:$0xff]
        %v971 = vld [vmem:[%s967 + $0x18] sm:$0xff]
        %v972 = vld [vmem:[%s967 + $0x20] sm:$0xff]
        %v973 = vld [vmem:[%s967 + $0x28] sm:$0xff]
        %v974 = vpack.c.bf16 %v964, %v963
        %975 = vmatprep.subr.bf16.mxu0 %v800
        %976 = vmatpush1.bf16.msra.mxu0 %v799
        %977 = vmatprep.subr.bf16.mxu0 %v797
        %978 = vmatpush1.bf16.msra.mxu0 %v796
        %979 = vmatprep.subr.bf16.mxu0 %v794
        %980 = vmatpush1.bf16.msra.mxu0 %v793
        %981 = vmatprep.subr.bf16.mxu0 %v791
        %982 = vmatpush1.bf16.msra.mxu0 %v790
        %983 = vmatprep.subr.bf16.mxu0 %v788
        %984 = vmatpush1.bf16.msra.mxu0 %v787
        %985 = vmatprep.subr.bf16.mxu0 %v785
        %986 = vmatpush1.bf16.msra.mxu0 %v784
        %987 = vmatprep.subr.bf16.mxu0 %v782
        %988 = vmatpush1.bf16.msra.mxu0 %v781
        %989 = vmatprep.subr.bf16.mxu0 %v779
        %990 = vmatpush1.bf16.msra.mxu0 %v778
        %991 = vmatprep.subr.bf16.mxu0 0
        %992 = vmatpush2.bf16.msra.mxu0 0
        %993 = vmatprep.subr.bf16.mxu0 0
        %994 = vmatpush2.bf16.msra.mxu0 0
        %995 = vmatprep.subr.bf16.mxu0 0
        %996 = vmatpush2.bf16.msra.mxu0 0
        %997 = vmatprep.subr.bf16.mxu0 0
        %998 = vmatpush2.bf16.msra.mxu0 0
        %999 = vmatprep.subr.bf16.mxu0 0
        %1000 = vmatpush2.bf16.msra.mxu0 0
        %1001 = vmatprep.subr.bf16.mxu0 0
        %1002 = vmatpush2.bf16.msra.mxu0 0
        %1003 = vmatprep.subr.bf16.mxu0 0
        %1004 = vmatpush2.bf16.msra.mxu0 0
        %1005 = vmatprep.subr.bf16.mxu0 0
        %1006 = vmatpush2.bf16.msra.mxu0 0
        %1007 = vmatprep.mubr.bf16.mxu0 0
        %1008 = vmatmul.mubr.bf16.gmra.mxu0 %v974
        %v1009 = vpop.f32.mrf.mxu0
        %v1010 = vadd.f32 %v686, %v1009
        %v1011 = vpop.f32.mrf.mxu0
        %v1012 = vadd.f32 %v690, %v1011
        %v1013 = vpop.f32.mrf.mxu0
        %v1014 = vadd.f32 %v686, %v1013
        %v1015 = vpop.f32.mrf.mxu0
        %v1016 = vadd.f32 %v690, %v1015
        %1017 = vdwg.mxu0
        %1018 = vmatprep.subr.bf16.mxu0 0
        %1019 = vmatpush1.bf16.msra.mxu0 %v801
        %1020 = vmatprep.subr.bf16.mxu0 0
        %1021 = vmatpush1.bf16.msra.mxu0 %v798
        %1022 = vmatprep.subr.bf16.mxu0 0
        %1023 = vmatpush1.bf16.msra.mxu0 %v795
        %1024 = vmatprep.subr.bf16.mxu0 0
        %1025 = vmatpush1.bf16.msra.mxu0 %v792
        %1026 = vmatprep.subr.bf16.mxu0 0
        %1027 = vmatpush1.bf16.msra.mxu0 %v789
        %1028 = vmatprep.subr.bf16.mxu0 0
        %1029 = vmatpush1.bf16.msra.mxu0 %v786
        %1030 = vmatprep.subr.bf16.mxu0 0
        %1031 = vmatpush1.bf16.msra.mxu0 %v783
        %1032 = vmatprep.subr.bf16.mxu0 0
        %1033 = vmatpush1.bf16.msra.mxu0 %v780
        %1034 = vmatprep.subr.bf16.mxu0 0
        %1035 = vmatpush2.bf16.msra.mxu0 0
        %1036 = vmatprep.subr.bf16.mxu0 0
        %1037 = vmatpush2.bf16.msra.mxu0 0
        %1038 = vmatprep.subr.bf16.mxu0 0
        %1039 = vmatpush2.bf16.msra.mxu0 0
        %1040 = vmatprep.subr.bf16.mxu0 0
        %1041 = vmatpush2.bf16.msra.mxu0 0
        %1042 = vmatprep.subr.bf16.mxu0 0
        %1043 = vmatpush2.bf16.msra.mxu0 0
        %1044 = vmatprep.subr.bf16.mxu0 0
        %1045 = vmatpush2.bf16.msra.mxu0 0
        %1046 = vmatprep.subr.bf16.mxu0 0
        %1047 = vmatpush2.bf16.msra.mxu0 0
        %1048 = vmatprep.subr.bf16.mxu0 0
        %1049 = vmatpush2.bf16.msra.mxu0 0
        %1050 = vmatprep.mubr.bf16.mxu0 0
        %1051 = vmatmul.mubr.bf16.gmra.mxu0 %v974
        %v1052 = vpop.f32.mrf.mxu0
        %v1053 = vadd.f32 %v694, %v1052
        %v1054 = vpop.f32.mrf.mxu0
        %v1055 = vpop.f32.mrf.mxu0
        %v1056 = vadd.f32 %v694, %v1055
        %v1057 = vpop.f32.mrf.mxu0
        %1058 = vdwg.mxu0
        %v1059 = vadd.f32 %v968, %v1010
        %v1060 = vadd.f32 %v971, %v1014
        %v1061 = vxor.u32 %v1059, 2147483648
        %v1062 = vxor.u32 %v1060, 2147483648
        %v1063 = vmul.f32 %v1061, 1.442695
        %v1064 = vpow.pop %v1063
        %v1065 = vmul.f32 %v1062, 1.442695
        %v1066 = vpow.pop %v1065
        %v1067 = vadd.f32 %v1064, 1.0
        %v1068 = vadd.f32 %v1066, 1.0
        %v1069 = vrcp.pop %v1067
        %v1070 = vmul.f32 1.0, %v1069
        %v1071 = vrcp.pop %v1068
        %v1072 = vmul.f32 1.0, %v1071
        %v1073 = vadd.f32 %v969, %v1012
        %v1074 = vadd.f32 %v972, %v1016
        %v1075 = vxor.u32 %v1073, 2147483648
        %v1076 = vxor.u32 %v1074, 2147483648
        %v1077 = vmul.f32 %v1075, 1.442695
        %v1078 = vpow.pop %v1077
        %v1079 = vmul.f32 %v1076, 1.442695
        %v1080 = vpow.pop %v1079
        %v1081 = vadd.f32 %v1078, 1.0
        %v1082 = vadd.f32 %v1080, 1.0
        %v1083 = vrcp.pop %v1081
        %v1084 = vmul.f32 1.0, %v1083
        %v1085 = vrcp.pop %v1082
        %v1086 = vmul.f32 1.0, %v1085
        %v1087 = vmul.f32 %v1070, %v1053
        %v1088 = vmul.f32 %v1072, %v1056
        %v1089 = vadd.f32 %v970, %v1087
        %v1090 = vadd.f32 %v973, %v1088
        %v1091 = vtanh.pop %v1089
        %v1092 = vtanh.pop %v1090
        %v1093 = vsub.f32 %v963, %v1091
        %v1094 = vsub.f32 %v964, %v1092
        %v1095 = vmul.f32 %v1084, %v1093
        %v1096 = vmul.f32 %v1086, %v1094
        %v1097 = vadd.f32 %v1091, %v1095
        %v1098 = vadd.f32 %v1092, %v1096
        %s1099 = sadd.s32 %s669, 1
        %v1100 = vstv %s1099
        %vm1101 = vcmp.lt.s32.totalorder %v1100, %v634
        %vm1102 = vcmp.lt.s32.totalorder %v1100, %v635
        %v1103 = vsel %vm1101, 1, 0
        %v1104 = vsel %vm1102, 1, 0
        %1105 = vset.pattern.permute.xlu0 0
        %1106 = vperm.xlu0 %1105, %v1103
        %v1107 = vpop.permute.xlu0 %1106
        %1108 = vset.pattern.permute.xlu0 0
        %1109 = vperm.xlu0 %1108, %v1104
        %v1110 = vpop.permute.xlu0 %1109
        %vm1111 = vcmp.eq.s32.totalorder %v1107, 1
        %vm1112 = vcmp.eq.s32.totalorder %v1110, 1
        %v1113 = vsel %vm1111, %v1097, %v963
        %v1114 = vsel %vm1112, %v1098, %v964
        %s1115 = smul.u32 4, 3
        %s1116 = smul.addr %s1115, 8
        %s1117 = scalar_lea.vmem [#allocation2], %s1116
        %v1118 = vld [vmem:[%s1117] sm:$0xff]
        %v1119 = vld [vmem:[%s1117 + $0x8] sm:$0xff]
        %v1120 = vld [vmem:[%s1117 + $0x10] sm:$0xff]
        %v1121 = vld [vmem:[%s1117 + $0x18] sm:$0xff]
        %v1122 = vld [vmem:[%s1117 + $0x20] sm:$0xff]
        %v1123 = vld [vmem:[%s1117 + $0x28] sm:$0xff]
        %v1124 = vpack.c.bf16 %v1114, %v1113
        %1125 = vmatprep.subr.bf16.mxu0 %v800
        %1126 = vmatpush1.bf16.msra.mxu0 %v799
        %1127 = vmatprep.subr.bf16.mxu0 %v797
        %1128 = vmatpush1.bf16.msra.mxu0 %v796
        %1129 = vmatprep.subr.bf16.mxu0 %v794
        %1130 = vmatpush1.bf16.msra.mxu0 %v793
        %1131 = vmatprep.subr.bf16.mxu0 %v791
        %1132 = vmatpush1.bf16.msra.mxu0 %v790
        %1133 = vmatprep.subr.bf16.mxu0 %v788
        %1134 = vmatpush1.bf16.msra.mxu0 %v787
        %1135 = vmatprep.subr.bf16.mxu0 %v785
        %1136 = vmatpush1.bf16.msra.mxu0 %v784
        %1137 = vmatprep.subr.bf16.mxu0 %v782
        %1138 = vmatpush1.bf16.msra.mxu0 %v781
        %1139 = vmatprep.subr.bf16.mxu0 %v779
        %1140 = vmatpush1.bf16.msra.mxu0 %v778
        %1141 = vmatprep.subr.bf16.mxu0 0
        %1142 = vmatpush2.bf16.msra.mxu0 0
        %1143 = vmatprep.subr.bf16.mxu0 0
        %1144 = vmatpush2.bf16.msra.mxu0 0
        %1145 = vmatprep.subr.bf16.mxu0 0
        %1146 = vmatpush2.bf16.msra.mxu0 0
        %1147 = vmatprep.subr.bf16.mxu0 0
        %1148 = vmatpush2.bf16.msra.mxu0 0
        %1149 = vmatprep.subr.bf16.mxu0 0
        %1150 = vmatpush2.bf16.msra.mxu0 0
        %1151 = vmatprep.subr.bf16.mxu0 0
        %1152 = vmatpush2.bf16.msra.mxu0 0
        %1153 = vmatprep.subr.bf16.mxu0 0
        %1154 = vmatpush2.bf16.msra.mxu0 0
        %1155 = vmatprep.subr.bf16.mxu0 0
        %1156 = vmatpush2.bf16.msra.mxu0 0
        %1157 = vmatprep.mubr.bf16.mxu0 0
        %1158 = vmatmul.mubr.bf16.gmra.mxu0 %v1124
        %v1159 = vpop.f32.mrf.mxu0
        %v1160 = vadd.f32 %v686, %v1159
        %v1161 = vpop.f32.mrf.mxu0
        %v1162 = vadd.f32 %v690, %v1161
        %v1163 = vpop.f32.mrf.mxu0
        %v1164 = vadd.f32 %v686, %v1163
        %v1165 = vpop.f32.mrf.mxu0
        %v1166 = vadd.f32 %v690, %v1165
        %1167 = vdwg.mxu0
        %1168 = vmatprep.subr.bf16.mxu0 0
        %1169 = vmatpush1.bf16.msra.mxu0 %v801
        %1170 = vmatprep.subr.bf16.mxu0 0
        %1171 = vmatpush1.bf16.msra.mxu0 %v798
        %1172 = vmatprep.subr.bf16.mxu0 0
        %1173 = vmatpush1.bf16.msra.mxu0 %v795
        %1174 = vmatprep.subr.bf16.mxu0 0
        %1175 = vmatpush1.bf16.msra.mxu0 %v792
        %1176 = vmatprep.subr.bf16.mxu0 0
        %1177 = vmatpush1.bf16.msra.mxu0 %v789
        %1178 = vmatprep.subr.bf16.mxu0 0
        %1179 = vmatpush1.bf16.msra.mxu0 %v786
        %1180 = vmatprep.subr.bf16.mxu0 0
        %1181 = vmatpush1.bf16.msra.mxu0 %v783
        %1182 = vmatprep.subr.bf16.mxu0 0
        %1183 = vmatpush1.bf16.msra.mxu0 %v780
        %1184 = vmatprep.subr.bf16.mxu0 0
        %1185 = vmatpush2.bf16.msra.mxu0 0
        %1186 = vmatprep.subr.bf16.mxu0 0
        %1187 = vmatpush2.bf16.msra.mxu0 0
        %1188 = vmatprep.subr.bf16.mxu0 0
        %1189 = vmatpush2.bf16.msra.mxu0 0
        %1190 = vmatprep.subr.bf16.mxu0 0
        %1191 = vmatpush2.bf16.msra.mxu0 0
        %1192 = vmatprep.subr.bf16.mxu0 0
        %1193 = vmatpush2.bf16.msra.mxu0 0
        %1194 = vmatprep.subr.bf16.mxu0 0
        %1195 = vmatpush2.bf16.msra.mxu0 0
        %1196 = vmatprep.subr.bf16.mxu0 0
        %1197 = vmatpush2.bf16.msra.mxu0 0
        %1198 = vmatprep.subr.bf16.mxu0 0
        %1199 = vmatpush2.bf16.msra.mxu0 0
        %1200 = vmatprep.mubr.bf16.mxu0 0
        %1201 = vmatmul.mubr.bf16.gmra.mxu0 %v1124
        %v1202 = vpop.f32.mrf.mxu0
        %v1203 = vadd.f32 %v694, %v1202
        %v1204 = vpop.f32.mrf.mxu0
        %v1205 = vpop.f32.mrf.mxu0
        %v1206 = vadd.f32 %v694, %v1205
        %v1207 = vpop.f32.mrf.mxu0
        %1208 = vdwg.mxu0
        %v1209 = vadd.f32 %v1118, %v1160
        %v1210 = vadd.f32 %v1121, %v1164
        %v1211 = vxor.u32 %v1209, 2147483648
        %v1212 = vxor.u32 %v1210, 2147483648
        %v1213 = vmul.f32 %v1211, 1.442695
        %v1214 = vpow.pop %v1213
        %v1215 = vmul.f32 %v1212, 1.442695
        %v1216 = vpow.pop %v1215
        %v1217 = vadd.f32 %v1214, 1.0
        %v1218 = vadd.f32 %v1216, 1.0
        %v1219 = vrcp.pop %v1217
        %v1220 = vmul.f32 1.0, %v1219
        %v1221 = vrcp.pop %v1218
        %v1222 = vmul.f32 1.0, %v1221
        %v1223 = vadd.f32 %v1119, %v1162
        %v1224 = vadd.f32 %v1122, %v1166
        %v1225 = vxor.u32 %v1223, 2147483648
        %v1226 = vxor.u32 %v1224, 2147483648
        %v1227 = vmul.f32 %v1225, 1.442695
        %v1228 = vpow.pop %v1227
        %v1229 = vmul.f32 %v1226, 1.442695
        %v1230 = vpow.pop %v1229
        %v1231 = vadd.f32 %v1228, 1.0
        %v1232 = vadd.f32 %v1230, 1.0
        %v1233 = vrcp.pop %v1231
        %v1234 = vmul.f32 1.0, %v1233
        %v1235 = vrcp.pop %v1232
        %v1236 = vmul.f32 1.0, %v1235
        %v1237 = vmul.f32 %v1220, %v1203
        %v1238 = vmul.f32 %v1222, %v1206
        %v1239 = vadd.f32 %v1120, %v1237
        %v1240 = vadd.f32 %v1123, %v1238
        %v1241 = vtanh.pop %v1239
        %v1242 = vtanh.pop %v1240
        %v1243 = vsub.f32 %v1113, %v1241
        %v1244 = vsub.f32 %v1114, %v1242
        %v1245 = vmul.f32 %v1234, %v1243
        %v1246 = vmul.f32 %v1236, %v1244
        %v1247 = vadd.f32 %v1241, %v1245
        %v1248 = vadd.f32 %v1242, %v1246
        %s1249 = sadd.s32 %s669, 2
        %v1250 = vstv %s1249
        %vm1251 = vcmp.lt.s32.totalorder %v1250, %v634
        %vm1252 = vcmp.lt.s32.totalorder %v1250, %v635
        %v1253 = vsel %vm1251, 1, 0
        %v1254 = vsel %vm1252, 1, 0
        %1255 = vset.pattern.permute.xlu0 0
        %1256 = vperm.xlu0 %1255, %v1253
        %v1257 = vpop.permute.xlu0 %1256
        %1258 = vset.pattern.permute.xlu0 0
        %1259 = vperm.xlu0 %1258, %v1254
        %v1260 = vpop.permute.xlu0 %1259
        %vm1261 = vcmp.eq.s32.totalorder %v1257, 1
        %vm1262 = vcmp.eq.s32.totalorder %v1260, 1
        %v1263 = vsel %vm1261, %v1247, %v1113
        %v1264 = vsel %vm1262, %v1248, %v1114
        %s1265 = smul.u32 6, 3
        %s1266 = smul.addr %s1265, 8
        %s1267 = scalar_lea.vmem [#allocation2], %s1266
        %v1268 = vld [vmem:[%s1267] sm:$0xff]
        %v1269 = vld [vmem:[%s1267 + $0x8] sm:$0xff]
        %v1270 = vld [vmem:[%s1267 + $0x10] sm:$0xff]
        %v1271 = vld [vmem:[%s1267 + $0x18] sm:$0xff]
        %v1272 = vld [vmem:[%s1267 + $0x20] sm:$0xff]
        %v1273 = vld [vmem:[%s1267 + $0x28] sm:$0xff]
        %v1274 = vpack.c.bf16 %v1264, %v1263
        %1275 = vmatprep.subr.bf16.mxu0 %v800
        %1276 = vmatpush1.bf16.msra.mxu0 %v799
        %1277 = vmatprep.subr.bf16.mxu0 %v797
        %1278 = vmatpush1.bf16.msra.mxu0 %v796
        %1279 = vmatprep.subr.bf16.mxu0 %v794
        %1280 = vmatpush1.bf16.msra.mxu0 %v793
        %1281 = vmatprep.subr.bf16.mxu0 %v791
        %1282 = vmatpush1.bf16.msra.mxu0 %v790
        %1283 = vmatprep.subr.bf16.mxu0 %v788
        %1284 = vmatpush1.bf16.msra.mxu0 %v787
        %1285 = vmatprep.subr.bf16.mxu0 %v785
        %1286 = vmatpush1.bf16.msra.mxu0 %v784
        %1287 = vmatprep.subr.bf16.mxu0 %v782
        %1288 = vmatpush1.bf16.msra.mxu0 %v781
        %1289 = vmatprep.subr.bf16.mxu0 %v779
        %1290 = vmatpush1.bf16.msra.mxu0 %v778
        %1291 = vmatprep.subr.bf16.mxu0 0
        %1292 = vmatpush2.bf16.msra.mxu0 0
        %1293 = vmatprep.subr.bf16.mxu0 0
        %1294 = vmatpush2.bf16.msra.mxu0 0
        %1295 = vmatprep.subr.bf16.mxu0 0
        %1296 = vmatpush2.bf16.msra.mxu0 0
        %1297 = vmatprep.subr.bf16.mxu0 0
        %1298 = vmatpush2.bf16.msra.mxu0 0
        %1299 = vmatprep.subr.bf16.mxu0 0
        %1300 = vmatpush2.bf16.msra.mxu0 0
        %1301 = vmatprep.subr.bf16.mxu0 0
        %1302 = vmatpush2.bf16.msra.mxu0 0
        %1303 = vmatprep.subr.bf16.mxu0 0
        %1304 = vmatpush2.bf16.msra.mxu0 0
        %1305 = vmatprep.subr.bf16.mxu0 0
        %1306 = vmatpush2.bf16.msra.mxu0 0
        %1307 = vmatprep.mubr.bf16.mxu0 0
        %1308 = vmatmul.mubr.bf16.gmra.mxu0 %v1274
        %v1309 = vpop.f32.mrf.mxu0
        %v1310 = vadd.f32 %v686, %v1309
        %v1311 = vpop.f32.mrf.mxu0
        %v1312 = vadd.f32 %v690, %v1311
        %v1313 = vpop.f32.mrf.mxu0
        %v1314 = vadd.f32 %v686, %v1313
        %v1315 = vpop.f32.mrf.mxu0
        %v1316 = vadd.f32 %v690, %v1315
        %1317 = vdwg.mxu0
        %1318 = vmatprep.subr.bf16.mxu0 0
        %1319 = vmatpush1.bf16.msra.mxu0 %v801
        %1320 = vmatprep.subr.bf16.mxu0 0
        %1321 = vmatpush1.bf16.msra.mxu0 %v798
        %1322 = vmatprep.subr.bf16.mxu0 0
        %1323 = vmatpush1.bf16.msra.mxu0 %v795
        %1324 = vmatprep.subr.bf16.mxu0 0
        %1325 = vmatpush1.bf16.msra.mxu0 %v792
        %1326 = vmatprep.subr.bf16.mxu0 0
        %1327 = vmatpush1.bf16.msra.mxu0 %v789
        %1328 = vmatprep.subr.bf16.mxu0 0
        %1329 = vmatpush1.bf16.msra.mxu0 %v786
        %1330 = vmatprep.subr.bf16.mxu0 0
        %1331 = vmatpush1.bf16.msra.mxu0 %v783
        %1332 = vmatprep.subr.bf16.mxu0 0
        %1333 = vmatpush1.bf16.msra.mxu0 %v780
        %1334 = vmatprep.subr.bf16.mxu0 0
        %1335 = vmatpush2.bf16.msra.mxu0 0
        %1336 = vmatprep.subr.bf16.mxu0 0
        %1337 = vmatpush2.bf16.msra.mxu0 0
        %1338 = vmatprep.subr.bf16.mxu0 0
        %1339 = vmatpush2.bf16.msra.mxu0 0
        %1340 = vmatprep.subr.bf16.mxu0 0
        %1341 = vmatpush2.bf16.msra.mxu0 0
        %1342 = vmatprep.subr.bf16.mxu0 0
        %1343 = vmatpush2.bf16.msra.mxu0 0
        %1344 = vmatprep.subr.bf16.mxu0 0
        %1345 = vmatpush2.bf16.msra.mxu0 0
        %1346 = vmatprep.subr.bf16.mxu0 0
        %1347 = vmatpush2.bf16.msra.mxu0 0
        %1348 = vmatprep.subr.bf16.mxu0 0
        %1349 = vmatpush2.bf16.msra.mxu0 0
        %1350 = vmatprep.mubr.bf16.mxu0 0
        %1351 = vmatmul.mubr.bf16.gmra.mxu0 %v1274
        %v1352 = vpop.f32.mrf.mxu0
        %v1353 = vadd.f32 %v694, %v1352
        %v1354 = vpop.f32.mrf.mxu0
        %v1355 = vpop.f32.mrf.mxu0
        %v1356 = vadd.f32 %v694, %v1355
        %v1357 = vpop.f32.mrf.mxu0
        %1358 = vdwg.mxu0
        %v1359 = vadd.f32 %v1268, %v1310
        %v1360 = vadd.f32 %v1271, %v1314
        %v1361 = vxor.u32 %v1359, 2147483648
        %v1362 = vxor.u32 %v1360, 2147483648
        %v1363 = vmul.f32 %v1361, 1.442695
        %v1364 = vpow.pop %v1363
        %v1365 = vmul.f32 %v1362, 1.442695
        %v1366 = vpow.pop %v1365
        %v1367 = vadd.f32 %v1364, 1.0
        %v1368 = vadd.f32 %v1366, 1.0
        %v1369 = vrcp.pop %v1367
        %v1370 = vmul.f32 1.0, %v1369
        %v1371 = vrcp.pop %v1368
        %v1372 = vmul.f32 1.0, %v1371
        %v1373 = vadd.f32 %v1269, %v1312
        %v1374 = vadd.f32 %v1272, %v1316
        %v1375 = vxor.u32 %v1373, 2147483648
        %v1376 = vxor.u32 %v1374, 2147483648
        %v1377 = vmul.f32 %v1375, 1.442695
        %v1378 = vpow.pop %v1377
        %v1379 = vmul.f32 %v1376, 1.442695
        %v1380 = vpow.pop %v1379
        %v1381 = vadd.f32 %v1378, 1.0
        %v1382 = vadd.f32 %v1380, 1.0
        %v1383 = vrcp.pop %v1381
        %v1384 = vmul.f32 1.0, %v1383
        %v1385 = vrcp.pop %v1382
        %v1386 = vmul.f32 1.0, %v1385
        %v1387 = vmul.f32 %v1370, %v1353
        %v1388 = vmul.f32 %v1372, %v1356
        %v1389 = vadd.f32 %v1270, %v1387
        %v1390 = vadd.f32 %v1273, %v1388
        %v1391 = vtanh.pop %v1389
        %v1392 = vtanh.pop %v1390
        %v1393 = vsub.f32 %v1263, %v1391
        %v1394 = vsub.f32 %v1264, %v1392
        %v1395 = vmul.f32 %v1384, %v1393
        %v1396 = vmul.f32 %v1386, %v1394
        %v1397 = vadd.f32 %v1391, %v1395
        %v1398 = vadd.f32 %v1392, %v1396
        %s1399 = sadd.s32 %s669, 3
        %v1400 = vstv %s1399
        %vm1401 = vcmp.lt.s32.totalorder %v1400, %v634
        %vm1402 = vcmp.lt.s32.totalorder %v1400, %v635
        %v1403 = vsel %vm1401, 1, 0
        %v1404 = vsel %vm1402, 1, 0
        %1405 = vset.pattern.permute.xlu0 0
        %1406 = vperm.xlu0 %1405, %v1403
        %v1407 = vpop.permute.xlu0 %1406
        %1408 = vset.pattern.permute.xlu0 0
        %1409 = vperm.xlu0 %1408, %v1404
        %v1410 = vpop.permute.xlu0 %1409
        %vm1411 = vcmp.eq.s32.totalorder %v1407, 1
        %vm1412 = vcmp.eq.s32.totalorder %v1410, 1
        %v1413 = vsel %vm1411, %v1397, %v1263
        %v1414 = vsel %vm1412, %v1398, %v1264
        %1415 = vst [vmem:[#allocation3] sm:$0xff] %v1413
        %1416 = vst [vmem:[#allocation3 + $0x8] sm:$0xff] %v1414
        %p1417 = scmp.eq.s32.totalorder %s23, 1
        // Predicated region
        $region77: #{sentiment_network_forward.1} parent=59 // pred_check
          %p1418 = pneg %p1417
        $region78: #{sentiment_network_forward.1} parent=59 // pred_check_branch
          %1420 = sbr.rel (%p1418) target = $region80
        $region79: #{sentiment_network_forward.1} parent=59 // pred_region
          %v1421 = vld [vmem:[#allocation3] sm:$0xff]
          %v1422 = vld [vmem:[#allocation3 + $0x8] sm:$0xff]
          %v1423 = vpack.c.bf16 %v1422, %v1421
          %v1424 = vld [vmem:[#allocation8] sm:$0xf]
          %v1425 = vld [vmem:[#allocation8 + $0x4] sm:$0xf]
          %v1426 = vld [vmem:[#allocation8 + $0x8] sm:$0xf]
          %v1427 = vld [vmem:[#allocation8 + $0xc] sm:$0xf]
          %v1428 = vld [vmem:[#allocation8 + $0x10] sm:$0xf]
          %v1429 = vld [vmem:[#allocation8 + $0x14] sm:$0xf]
          %v1430 = vld [vmem:[#allocation8 + $0x18] sm:$0xf]
          %v1431 = vld [vmem:[#allocation8 + $0x1c] sm:$0xf]
          %v1432 = vld [vmem:[#allocation8 + $0x20] sm:$0xf]
          %v1433 = vld [vmem:[#allocation8 + $0x24] sm:$0xf]
          %v1434 = vld [vmem:[#allocation8 + $0x28] sm:$0xf]
          %v1435 = vld [vmem:[#allocation8 + $0x2c] sm:$0xf]
          %v1436 = vld [vmem:[#allocation8 + $0x30] sm:$0xf]
          %v1437 = vld [vmem:[#allocation8 + $0x34] sm:$0xf]
          %v1438 = vld [vmem:[#allocation8 + $0x38] sm:$0xf]
          %v1439 = vld [vmem:[#allocation8 + $0x3c] sm:$0xf]
          %v1440 = vld [vmem:[%s7] sm:$0x1]
          %v1442 = vlaneseq
          %v1443 = vshrl.u32 %v1442, 7
          %v1444 = vsub.s32 0, %v1443
          %v1445 = vrot.slane %v1440, %v1444
          %v1463 = vunpack.c.l.b16 %v1424
          %v1464 = vunpack.c.l.b16 %v1425
          %v1465 = vunpack.c.l.b16 %v1426
          %v1466 = vunpack.c.l.b16 %v1427
          %v1467 = vunpack.c.l.b16 %v1428
          %v1468 = vunpack.c.l.b16 %v1429
          %v1469 = vunpack.c.l.b16 %v1430
          %v1470 = vunpack.c.l.b16 %v1431
          %v1471 = vunpack.c.l.b16 %v1432
          %v1472 = vunpack.c.l.b16 %v1433
          %v1473 = vunpack.c.l.b16 %v1434
          %v1474 = vunpack.c.l.b16 %v1435
          %v1475 = vunpack.c.l.b16 %v1436
          %v1476 = vunpack.c.l.b16 %v1437
          %v1477 = vunpack.c.l.b16 %v1438
          %v1478 = vunpack.c.l.b16 %v1439
          %v1479 = vpack.c.b16 %v1464, %v1463
          %v1480 = vpack.c.b16 %v1466, %v1465
          %v1481 = vpack.c.b16 %v1468, %v1467
          %v1482 = vpack.c.b16 %v1470, %v1469
          %v1483 = vpack.c.b16 %v1472, %v1471
          %v1484 = vpack.c.b16 %v1474, %v1473
          %v1485 = vpack.c.b16 %v1476, %v1475
          %v1486 = vpack.c.b16 %v1478, %v1477
          %1495 = vmatprep.subr.bf16.mxu0 0
          %1496 = vmatpush1.bf16.msra.mxu0 %v1486
          %1497 = vmatprep.subr.bf16.mxu0 0
          %1498 = vmatpush1.bf16.msra.mxu0 %v1485
          %1499 = vmatprep.subr.bf16.mxu0 0
          %1500 = vmatpush1.bf16.msra.mxu0 %v1484
          %1501 = vmatprep.subr.bf16.mxu0 0
          %1502 = vmatpush1.bf16.msra.mxu0 %v1483
          %1503 = vmatprep.subr.bf16.mxu0 0
          %1504 = vmatpush1.bf16.msra.mxu0 %v1482
          %1505 = vmatprep.subr.bf16.mxu0 0
          %1506 = vmatpush1.bf16.msra.mxu0 %v1481
          %1507 = vmatprep.subr.bf16.mxu0 0
          %1508 = vmatpush1.bf16.msra.mxu0 %v1480
          %1509 = vmatprep.subr.bf16.mxu0 0
          %1510 = vmatpush1.bf16.msra.mxu0 %v1479
          %1511 = vmatprep.subr.bf16.mxu0 0
          %1512 = vmatpush2.bf16.msra.mxu0 0
          %1513 = vmatprep.subr.bf16.mxu0 0
          %1514 = vmatpush2.bf16.msra.mxu0 0
          %1515 = vmatprep.subr.bf16.mxu0 0
          %1516 = vmatpush2.bf16.msra.mxu0 0
          %1517 = vmatprep.subr.bf16.mxu0 0
          %1518 = vmatpush2.bf16.msra.mxu0 0
          %1519 = vmatprep.subr.bf16.mxu0 0
          %1520 = vmatpush2.bf16.msra.mxu0 0
          %1521 = vmatprep.subr.bf16.mxu0 0
          %1522 = vmatpush2.bf16.msra.mxu0 0
          %1523 = vmatprep.subr.bf16.mxu0 0
          %1524 = vmatpush2.bf16.msra.mxu0 0
          %1525 = vmatprep.subr.bf16.mxu0 0
          %1526 = vmatpush2.bf16.msra.mxu0 0
          %1527 = vmatprep.mubr.bf16.mxu0 0
          %1528 = vmatmul.mubr.bf16.gmra.mxu0 %v1423
          %v1529 = vpop.f32.mrf.mxu0
          %v1530 = vadd.f32 %v1445, %v1529
          %v1531 = vpop.f32.mrf.mxu0
          %v1532 = vpop.f32.mrf.mxu0
          %v1533 = vadd.f32 %v1445, %v1532
          %v1534 = vpop.f32.mrf.mxu0
          %1535 = vdwg.mxu0
          %v1536 = vmax.f32 %v1530, 0.0
          %v1537 = vmax.f32 %v1533, 0.0
          %v1538 = vpack.c.bf16 %v1537, %v1536
          %v1539 = vld [vmem:[%s8] sm:$0xf]
          %v1540 = vld [vmem:[%s8 + $0x4] sm:$0xf]
          %v1541 = vld [vmem:[%s8 + $0x8] sm:$0xf]
          %v1542 = vld [vmem:[%s8 + $0xc] sm:$0xf]
          %v1543 = vld [vmem:[%s8 + $0x10] sm:$0xf]
          %v1544 = vld [vmem:[%s8 + $0x14] sm:$0xf]
          %v1545 = vld [vmem:[%s8 + $0x18] sm:$0xf]
          %v1546 = vld [vmem:[%s8 + $0x1c] sm:$0xf]
          %v1547 = vld [vmem:[%s8 + $0x20] sm:$0xf]
          %v1548 = vld [vmem:[%s8 + $0x24] sm:$0xf]
          %v1549 = vld [vmem:[%s8 + $0x28] sm:$0xf]
          %v1550 = vld [vmem:[%s8 + $0x2c] sm:$0xf]
          %v1551 = vld [vmem:[%s8 + $0x30] sm:$0xf]
          %v1552 = vld [vmem:[%s8 + $0x34] sm:$0xf]
          %v1553 = vld [vmem:[%s8 + $0x38] sm:$0xf]
          %v1554 = vld [vmem:[%s8 + $0x3c] sm:$0xf]
          %v1555 = vld [vmem:[%s9] sm:$0x1]
          %v1557 = vlaneseq
          %v1558 = vshrl.u32 %v1557, 7
          %v1559 = vsub.s32 0, %v1558
          %v1560 = vrot.slane %v1555, %v1559
          %v1578 = vunpack.c.l.b16 %v1539
          %v1579 = vunpack.c.l.b16 %v1540
          %v1580 = vunpack.c.l.b16 %v1541
          %v1581 = vunpack.c.l.b16 %v1542
          %v1582 = vunpack.c.l.b16 %v1543
          %v1583 = vunpack.c.l.b16 %v1544
          %v1584 = vunpack.c.l.b16 %v1545
          %v1585 = vunpack.c.l.b16 %v1546
          %v1586 = vunpack.c.l.b16 %v1547
          %v1587 = vunpack.c.l.b16 %v1548
          %v1588 = vunpack.c.l.b16 %v1549
          %v1589 = vunpack.c.l.b16 %v1550
          %v1590 = vunpack.c.l.b16 %v1551
          %v1591 = vunpack.c.l.b16 %v1552
          %v1592 = vunpack.c.l.b16 %v1553
          %v1593 = vunpack.c.l.b16 %v1554
          %v1594 = vpack.c.b16 %v1579, %v1578
          %v1595 = vpack.c.b16 %v1581, %v1580
          %v1596 = vpack.c.b16 %v1583, %v1582
          %v1597 = vpack.c.b16 %v1585, %v1584
          %v1598 = vpack.c.b16 %v1587, %v1586
          %v1599 = vpack.c.b16 %v1589, %v1588
          %v1600 = vpack.c.b16 %v1591, %v1590
          %v1601 = vpack.c.b16 %v1593, %v1592
          %1610 = vmatprep.subr.bf16.mxu0 0
          %1611 = vmatpush1.bf16.msra.mxu0 %v1601
          %1612 = vmatprep.subr.bf16.mxu0 0
          %1613 = vmatpush1.bf16.msra.mxu0 %v1600
          %1614 = vmatprep.subr.bf16.mxu0 0
          %1615 = vmatpush1.bf16.msra.mxu0 %v1599
          %1616 = vmatprep.subr.bf16.mxu0 0
          %1617 = vmatpush1.bf16.msra.mxu0 %v1598
          %1618 = vmatprep.subr.bf16.mxu0 0
          %1619 = vmatpush1.bf16.msra.mxu0 %v1597
          %1620 = vmatprep.subr.bf16.mxu0 0
          %1621 = vmatpush1.bf16.msra.mxu0 %v1596
          %1622 = vmatprep.subr.bf16.mxu0 0
          %1623 = vmatpush1.bf16.msra.mxu0 %v1595
          %1624 = vmatprep.subr.bf16.mxu0 0
          %1625 = vmatpush1.bf16.msra.mxu0 %v1594
          %1626 = vmatprep.subr.bf16.mxu0 0
          %1627 = vmatpush2.bf16.msra.mxu0 0
          %1628 = vmatprep.subr.bf16.mxu0 0
          %1629 = vmatpush2.bf16.msra.mxu0 0
          %1630 = vmatprep.subr.bf16.mxu0 0
          %1631 = vmatpush2.bf16.msra.mxu0 0
          %1632 = vmatprep.subr.bf16.mxu0 0
          %1633 = vmatpush2.bf16.msra.mxu0 0
          %1634 = vmatprep.subr.bf16.mxu0 0
          %1635 = vmatpush2.bf16.msra.mxu0 0
          %1636 = vmatprep.subr.bf16.mxu0 0
          %1637 = vmatpush2.bf16.msra.mxu0 0
          %1638 = vmatprep.subr.bf16.mxu0 0
          %1639 = vmatpush2.bf16.msra.mxu0 0
          %1640 = vmatprep.subr.bf16.mxu0 0
          %1641 = vmatpush2.bf16.msra.mxu0 0
          %1642 = vmatprep.mubr.bf16.mxu0 0
          %1643 = vmatmul.mubr.bf16.gmra.mxu0 %v1538
          %v1644 = vpop.f32.mrf.mxu0
          %v1645 = vadd.f32 %v1560, %v1644
          %v1646 = vpop.f32.mrf.mxu0
          %v1647 = vpop.f32.mrf.mxu0
          %v1648 = vadd.f32 %v1560, %v1647
          %v1649 = vpop.f32.mrf.mxu0
          %1650 = vdwg.mxu0
          %1651 = vst [vmem:[%s10] sm:$0xff] %v1645
          %1652 = vst [vmem:[%s10 + $0x8] sm:$0xff] %v1648
        $region80: #{sentiment_network_forward.1} parent=59 // pred_fallthru
          _
        // Predicated region
        $region81: #{sentiment_network_forward.1} parent=59 // pred_check
          %p1653 = pneg %p251
        $region82: #{sentiment_network_forward.1} parent=59 // pred_check_branch
          %1655 = sbr.rel (%p1653) target = $region84
        $region83: #{sentiment_network_forward.1} parent=59 // pred_region
          _
        $region84: #{sentiment_network_forward.1} parent=59 // pred_fallthru
          _
        // Predicated region
        $region85: #{sentiment_network_forward.1} parent=59 // pred_check
          %p1656 = pneg %p251
        $region86: #{sentiment_network_forward.1} parent=59 // pred_check_branch
          %1658 = sbr.rel (%p1656) target = $region88
        $region87: #{sentiment_network_forward.1} parent=59 // pred_region
          _
        $region88: #{sentiment_network_forward.1} parent=59 // pred_fallthru
          _
      $region60: #{sentiment_network_forward.1} parent=5 // pred_fallthru
        _
      %p1659 = scmp.le.s32.totalorder 2, %s18
      // Predicated region
      $region89: #{sentiment_network_forward.1} parent=5 // pred_check
        %p1660 = pneg %p1659
      $region90: #{sentiment_network_forward.1} parent=5 // pred_check_branch
        %1662 = sbr.rel (%p1660) target = $region92
      $region91: #{sentiment_network_forward.1} parent=5 // pred_region
        %s1663 = ssub.s32 %s18, 2
      $region92: #{sentiment_network_forward.1} parent=5 // pred_fallthru
        _
    $region6: #{sentiment_network_forward.1} parent=1 // loop_footer
      %s22 = sadd.s32 1, %s18
    $region7: #{sentiment_network_forward.1} parent=1 // loop_footer_branch
      %17 = sbr.rel target = $region3
    $region8: #{sentiment_network_forward.1} parent=1 // loop_exit
      _
    %1664 = vsyncpa [#allocation5], 1
    %s1665 = scalar_lea.sflag [#allocation5], 1
    %1666 = vsyncpa %s1665, 1
    %1667 = vsyncpa [#allocation7], 1

</llo_original>
